<compile_context>
chip_gen: v7x
topology: tpu7x:2x2x1
jax: 0.10.0
libtpu: 0.0.40
codegen_flags: <defaults>
</compile_context>

<pallas_src>
import math
import functools

import jax
import jax.numpy as jnp
from jax.experimental import pallas as pl
from jax.experimental.pallas import tpu as pltpu


# ---------------------------------------------------------------------------
# Kernels
# ---------------------------------------------------------------------------

def _multi_relu_kernel_fused(x_ref, w_ref, b_ref, o_ref, *, is_final, precision):
    """Grid-less whole-problem kernel: all operands resident in VMEM.

    x_ref: (C, B, IN)   w_ref: (C, IN, OUT)   b_ref: (C, 1, OUT)
    o_ref: (C, B, OUT)  -- written channel-major, no wrapper transpose needed.
    """
    # Batched matmul over channels -> C MXU pushes, f32 accumulate.
    y = jax.lax.dot_general(
        x_ref[...], w_ref[...],
        dimension_numbers=(((2,), (1,)), ((0,), (0,))),
        preferred_element_type=jnp.float32,
        precision=precision)
    # Fused VPU/EUP epilogue: bias broadcast + activation.
    y = y + b_ref[...].astype(jnp.float32)
    y = jnp.tanh(y) if is_final else jnp.maximum(y, 0.0)
    o_ref[...] = y.astype(o_ref.dtype)


def _multi_relu_kernel_gridded(x_ref, w_ref, b_ref, o_ref, acc_ref, *,
                               is_final, precision):
    """Gridded production kernel: grid = (C, M, N, K), K innermost.

    Kernel views (leading channel axis squeezed by the BlockSpecs):
      x_ref: (tm, tk)   w_ref: (tk, tn)   b_ref: (1, tn)
      o_ref: (tm, tn)   acc_ref: (tm, tn) f32 VMEM accumulator
    """
    k = pl.program_id(3)

    @pl.when(k == 0)
    def _init():
        acc_ref[...] = jnp.zeros_like(acc_ref)

    acc_ref[...] += jnp.dot(x_ref[...], w_ref[...],
                            preferred_element_type=jnp.float32,
                            precision=precision)

    @pl.when(k == pl.num_programs(3) - 1)
    def _finalize():
        y = acc_ref[...] + b_ref[...].astype(jnp.float32)
        y = jnp.tanh(y) if is_final else jnp.maximum(y, 0.0)
        o_ref[...] = y.astype(o_ref.dtype)


# ---------------------------------------------------------------------------
# pallas_call wrappers
# ---------------------------------------------------------------------------

def _multi_relu_fused(x, weight, bias, *, out_dtype, is_final, precision):
    C, B, IN = x.shape
    OUT = weight.shape[-1]
    kernel = functools.partial(_multi_relu_kernel_fused,
                               is_final=is_final, precision=precision)
    return pl.pallas_call(
        kernel,
        out_shape=jax.ShapeDtypeStruct((C, B, OUT), out_dtype),
        in_specs=[
            pl.BlockSpec(memory_space=pltpu.MemorySpace.VMEM),
            pl.BlockSpec(memory_space=pltpu.MemorySpace.VMEM),
            pl.BlockSpec(memory_space=pltpu.MemorySpace.VMEM),
        ],
        out_specs=pl.BlockSpec(memory_space=pltpu.MemorySpace.VMEM),
    )(x, weight, bias)


def _multi_relu_gridded(x, weight, bias, *, out_dtype, is_final, precision,
                        tm=128, tn=128, tk=256):
    C, B, IN = x.shape
    OUT = weight.shape[-1]
    tm = min(tm, B)
    tn = min(tn, OUT)
    tk = min(tk, IN)
    # TODO(synk): handle ragged (non-tile-divisible) tails with masked edge tiles.
    assert B % tm == 0 and OUT % tn == 0 and IN % tk == 0, (
        "gridded path requires tile-divisible shapes")
    grid = (C, B // tm, OUT // tn, IN // tk)

    kernel = functools.partial(_multi_relu_kernel_gridded,
                               is_final=is_final, precision=precision)
    return pl.pallas_call(
        kernel,
        out_shape=jax.ShapeDtypeStruct((C, B, OUT), out_dtype),
        grid=grid,
        in_specs=[
            pl.BlockSpec((None, tm, tk), lambda c, i, j, k: (c, i, k)),
            pl.BlockSpec((None, tk, tn), lambda c, i, j, k: (c, k, j)),
            pl.BlockSpec((None, 1, tn), lambda c, i, j, k: (c, 0, j)),
        ],
        out_specs=pl.BlockSpec((None, tm, tn), lambda c, i, j, k: (c, i, j)),
        scratch_shapes=[pltpu.VMEM((tm, tn), jnp.float32)],
        compiler_params=pltpu.CompilerParams(
            # C / M / N parallel -> megacore sharding on v7x; K is the
            # accumulation axis and must stay "arbitrary".
            dimension_semantics=("parallel", "parallel", "parallel", "arbitrary"),
            # Explicit VMEM budget: v5e's default scoped limit is only 16 MiB.
            vmem_limit_bytes=32 * 1024 * 1024,
        ),
    )(x, weight, bias)


_FUSED_VMEM_BUDGET_BYTES = 4 * 1024 * 1024  # grid-less path only for small problems


def multi_relu_layer(x, weight, bias, *, is_final=False, compute_dtype=None):
    """act(bmm(x, weight) + bias); act = Tanh if is_final else ReLU.

    x: (C, B, IN)   weight: (C, IN, OUT)   bias: (C, 1, OUT) -> (C, B, OUT)
    """
    C, B, IN = x.shape
    OUT = weight.shape[-1]
    out_dtype = x.dtype

    if compute_dtype is not None:
        # Pre-cast in the wrapper so DMAs move narrow bytes and the kernel's
        # VALU path does no converts.  (In production, store the params in
        # compute_dtype at init instead of casting every call.)
        x = x.astype(compute_dtype)
        weight = weight.astype(compute_dtype)
        precision = jax.lax.Precision.DEFAULT    # single bf16 MXU pass
    else:
        precision = jax.lax.Precision.HIGHEST    # deterministic f32 numerics

    total_bytes = (x.size * x.dtype.itemsize
                   + weight.size * weight.dtype.itemsize
                   + bias.size * bias.dtype.itemsize
                   + C * B * OUT * jnp.dtype(out_dtype).itemsize)
    if total_bytes <= _FUSED_VMEM_BUDGET_BYTES:
        return _multi_relu_fused(x, weight, bias, out_dtype=out_dtype,
                                 is_final=is_final, precision=precision)
    return _multi_relu_gridded(x, weight, bias, out_dtype=out_dtype,
                               is_final=is_final, precision=precision)


# ---------------------------------------------------------------------------
# Param init (mirrors LinearWithChannel.reset_parameters)
# ---------------------------------------------------------------------------

def init_params(key, in_features, out_features, n_channels):
    # kaiming_uniform_(weight, a=sqrt(3)) -> U(-bw, bw), bw = sqrt(1.5 / fan_in)
    # torch fan_in for a 3-D (C, in, out) tensor = in * out
    # bias ~ U(-1/sqrt(fan_in), 1/sqrt(fan_in))
    kw, kb = jax.random.split(key)
    fan_in = in_features * out_features
    bw = math.sqrt(1.5 / fan_in)
    weight = jax.random.uniform(
        kw, (n_channels, in_features, out_features),
        dtype=jnp.float32, minval=-bw, maxval=bw)
    bb = 1.0 / math.sqrt(fan_in)
    bias = jax.random.uniform(
        kb, (n_channels, 1, out_features),
        dtype=jnp.float32, minval=-bb, maxval=bb)
    return weight, bias


if __name__ == "__main__":
    key = jax.random.PRNGKey(0)
    hi = jax.lax.Precision.HIGHEST

    # Demo shapes: n_channels=4, batch rows=8, in_features=32, out_features=32.
    C, B, IN, OUT = 4, 8, 32, 32
    kx, kp = jax.random.split(key)
    x = jax.random.normal(kx, (C, B, IN), dtype=jnp.float32)
    weight, bias = init_params(kp, IN, OUT, C)

    # 1) Fused grid-less path, is_final=False -> ReLU.
    out = jax.block_until_ready(multi_relu_layer(x, weight, bias))
    ref = jnp.maximum(
        jnp.einsum("cbi,cio->cbo", x, weight, precision=hi) + bias, 0.0)
    assert out.shape == (C, B, OUT)
    assert jnp.allclose(out, ref, atol=1e-5, rtol=1e-5)

    # 2) Fused grid-less path, is_final=True -> Tanh (slightly looser tol for
    #    EUP-vs-XLA transcendental approximation differences).
    out_t = jax.block_until_ready(multi_relu_layer(x, weight, bias, is_final=True))
    ref_t = jnp.tanh(jnp.einsum("cbi,cio->cbo", x, weight, precision=hi) + bias)
    assert jnp.allclose(out_t, ref_t, atol=5e-5, rtol=1e-4)

    # 3) Gridded production path (forced) on a small tile-divisible shape.
    C2, B2, IN2, OUT2 = 2, 16, 256, 128
    kx2, kp2 = jax.random.split(jax.random.PRNGKey(1))
    x2 = jax.random.normal(kx2, (C2, B2, IN2), dtype=jnp.float32)
    w2, b2 = init_params(kp2, IN2, OUT2, C2)
    out2 = jax.block_until_ready(
        _multi_relu_gridded(x2, w2, b2, out_dtype=x2.dtype, is_final=False,
                            precision=hi, tm=8, tn=128, tk=128))
    ref2 = jnp.maximum(
        jnp.einsum("cbi,cio->cbo", x2, w2, precision=hi) + b2, 0.0)
    assert out2.shape == (C2, B2, OUT2)
    assert jnp.allclose(out2, ref2, atol=1e-5, rtol=1e-5)

    print("KERNEL_OK")
</pallas_src>

<mosaic_0001>
module attributes {stable_mosaic.version = 11 : i64} {
  func.func @_multi_relu_kernel_fused(%arg0: memref<4x8x32xf32, #tpu.memory_space<vmem>>, %arg1: memref<4x32x32xf32, #tpu.memory_space<vmem>>, %arg2: memref<4x1x32xf32, #tpu.memory_space<vmem>>, %arg3: memref<4x8x32xf32, #tpu.memory_space<vmem>>) attributes {dimension_semantics = [], scalar_prefetch = 0 : i64, scratch_operands = 0 : i64, tpu.core_type = #tpu.core_type<tc>} {
    %c0 = arith.constant 0 : index
    %c0_0 = arith.constant 0 : index
    %c0_1 = arith.constant 0 : index
    %0 = vector.load %arg0[%c0, %c0_0, %c0_1] : memref<4x8x32xf32, #tpu.memory_space<vmem>>, vector<4x8x32xf32>
    %c0_2 = arith.constant 0 : index
    %c0_3 = arith.constant 0 : index
    %c0_4 = arith.constant 0 : index
    %1 = vector.load %arg1[%c0_2, %c0_3, %c0_4] : memref<4x32x32xf32, #tpu.memory_space<vmem>>, vector<4x32x32xf32>
    %cst = arith.constant dense<0.000000e+00> : vector<4x8x32xf32>
    %2 = tpu.matmul %0, %1, %cst {dimension_numbers = #tpu.dot_dimension_numbers<[2], [1], [1], [2], [0, 0, 0, 1, 1, 2], [0], [0]>, precision = #tpu.contract_precision<fp32>} : vector<4x8x32xf32>, vector<4x32x32xf32>, vector<4x8x32xf32> -> vector<4x8x32xf32>
    %c0_5 = arith.constant 0 : index
    %c0_6 = arith.constant 0 : index
    %c0_7 = arith.constant 0 : index
    %3 = vector.load %arg2[%c0_5, %c0_6, %c0_7] : memref<4x1x32xf32, #tpu.memory_space<vmem>>, vector<4x1x32xf32>
    %4 = vector.broadcast %3 : vector<4x1x32xf32> to vector<4x8x32xf32>
    %5 = arith.addf %2, %4 : vector<4x8x32xf32>
    %cst_8 = arith.constant 0.000000e+00 : f32
    %6 = vector.broadcast %cst_8 : f32 to vector<4x8x32xf32>
    %7 = arith.maximumf %5, %6 : vector<4x8x32xf32>
    %c0_9 = arith.constant 0 : index
    %c0_10 = arith.constant 0 : index
    %c0_11 = arith.constant 0 : index
    %8 = vector.load %arg3[%c0_9, %c0_10, %c0_11] : memref<4x8x32xf32, #tpu.memory_space<vmem>>, vector<4x8x32xf32>
    tpu.vector_store %arg3[%c0_9, %c0_10, %c0_11], %7 {strides = array<i32>} : memref<4x8x32xf32, #tpu.memory_space<vmem>>, vector<4x8x32xf32>,
    return
  }
}

</mosaic_0001>

<llo_original>
// kernel: tpu_custom_call.1
$region0: #{tpu_custom_call.1}
  #allocation0 [shape = 'u32[]', space=smem, size = 0x4, offset = 0x4, fixed_abs, tag = 'smem constant byte address 0x4 - core index']
  #allocation1 [shape = 'u32[144,128]{1,0:T(1,128)}', space=vmem, size = 0x12000, scoped, tag = 'internal scratch']
  %s0 = inlined_call_operand.hbm [shape: f32[4,8,32], index: 0, kind: input, shape index: {}]
  %s1 = inlined_call_operand.hbm [shape: f32[4,32,32], index: 1, kind: input, shape index: {}]
  %s2 = inlined_call_operand.vmem [shape: f32[4,1,32], index: 2, kind: input, shape index: {}]
  %s3 = inlined_call_operand.hbm [shape: f32[4,8,32], index: 3, kind: output, shape index: {}]
  %s4 = sld [smem:[#allocation0]]
  $region30: #{tpu_custom_call.1} parent=0
    _
  %s6 = ssub.s32 1, %s4
  %s7 = scalar_select 0, %s6, %s4
  $region1: #{tpu_custom_call.1} parent=0
    #allocation2 [shape = 'u8[16384]{0}', space=vmem, size = 0x4000, scoped, tag = 'input window, operand 0, single buffered']
    #allocation3 [shape = 's32[1]{0}', space=sflag, size = 0x4, scoped, tag = 'scoped memory for tpu_custom_call.1']
    #allocation4 [shape = 's32[1]{0}', space=sflag, size = 0x4, scoped, tag = 'scoped memory for tpu_custom_call.1']
    #allocation5 [shape = 'u8[65536]{0}', space=vmem, size = 0x10000, scoped, tag = 'input window, operand 1, single buffered']
    #allocation6 [shape = 's32[1]{0}', space=sflag, size = 0x4, scoped, tag = 'scoped memory for tpu_custom_call.1']
    #allocation7 [shape = 'u8[16384]{0}', space=vmem, size = 0x4000, scoped, tag = 'output window, operand 0, single buffered']
    %8 = vsyncpa [#allocation3], 0
    %9 = vsyncpa [#allocation6], 0
    %10 = vsyncpa [#allocation4], 0
    // Predicated region
    $region2: #{tpu_custom_call.1} parent=1 // pred_check
      _
    $region3: #{tpu_custom_call.1} parent=1 // pred_check_branch
      %12 = sbr.rel (0) target = $region5
    $region4: #{tpu_custom_call.1} parent=1 // pred_region
      %s14 = ssub.s32 512, 512
      %15 = vsyncadd [#allocation3], %s14
      %s16 = sshll.u32 [#allocation2], 4
      %s17 = int_to_ptr.vmem [resolvable:$true] %s16
      %22 = dma.hbm_to_vmem [thread:$0]  %s0, 512, %s17, [#allocation3], 128, 128, 8
    $region5: #{tpu_custom_call.1} parent=1 // pred_fallthru
      _
    // Predicated region
    $region6: #{tpu_custom_call.1} parent=1 // pred_check
      _
    $region7: #{tpu_custom_call.1} parent=1 // pred_check_branch
      %24 = sbr.rel (0) target = $region9
    $region8: #{tpu_custom_call.1} parent=1 // pred_region
      %s26 = ssub.s32 2048, 2048
      %27 = vsyncadd [#allocation6], %s26
      %s28 = sshll.u32 [#allocation5], 4
      %s29 = int_to_ptr.vmem [resolvable:$true] %s28
      %34 = dma.hbm_to_vmem [thread:$0]  %s1, 2048, %s29, [#allocation6], 128, 128, 8
    $region9: #{tpu_custom_call.1} parent=1 // pred_fallthru
      _
    // Predicated region
    $region10: #{tpu_custom_call.1} parent=1 // pred_check
      _
    $region11: #{tpu_custom_call.1} parent=1 // pred_check_branch
      %36 = sbr.rel (0) target = $region13
    $region12: #{tpu_custom_call.1} parent=1 // pred_region
      _
    $region13: #{tpu_custom_call.1} parent=1 // pred_fallthru
      _
    // Predicated region
    $region14: #{tpu_custom_call.1} parent=1 // pred_check
      _
    $region15: #{tpu_custom_call.1} parent=1 // pred_check_branch
      %38 = sbr.rel (0) target = $region17
    $region16: #{tpu_custom_call.1} parent=1 // pred_region
      %39 = dma.done [#allocation3], 512
    $region17: #{tpu_custom_call.1} parent=1 // pred_fallthru
      _
    // Predicated region
    $region18: #{tpu_custom_call.1} parent=1 // pred_check
      _
    $region19: #{tpu_custom_call.1} parent=1 // pred_check_branch
      %41 = sbr.rel (0) target = $region21
    $region20: #{tpu_custom_call.1} parent=1 // pred_region
      %42 = dma.done [#allocation6], 2048
    $region21: #{tpu_custom_call.1} parent=1 // pred_fallthru
      _
    %v43 = vld [vmem:[#allocation2] sm:$0xff]
    %v44 = vld [vmem:[#allocation2 + $0x8] sm:$0xff]
    %v45 = vld [vmem:[#allocation2 + $0x10] sm:$0xff]
    %v46 = vld [vmem:[#allocation2 + $0x18] sm:$0xff]
    %v47 = vld [vmem:[#allocation5] sm:$0xff]
    %v48 = vld [vmem:[#allocation5 + $0x8] sm:$0xff]
    %v49 = vld [vmem:[#allocation5 + $0x10] sm:$0xff]
    %v50 = vld [vmem:[#allocation5 + $0x18] sm:$0xff]
    %v51 = vld [vmem:[#allocation5 + $0x20] sm:$0xff]
    %v52 = vld [vmem:[#allocation5 + $0x28] sm:$0xff]
    %v53 = vld [vmem:[#allocation5 + $0x30] sm:$0xff]
    %v54 = vld [vmem:[#allocation5 + $0x38] sm:$0xff]
    %v55 = vld [vmem:[#allocation5 + $0x40] sm:$0xff]
    %v56 = vld [vmem:[#allocation5 + $0x48] sm:$0xff]
    %v57 = vld [vmem:[#allocation5 + $0x50] sm:$0xff]
    %v58 = vld [vmem:[#allocation5 + $0x58] sm:$0xff]
    %v59 = vld [vmem:[#allocation5 + $0x60] sm:$0xff]
    %v60 = vld [vmem:[#allocation5 + $0x68] sm:$0xff]
    %v61 = vld [vmem:[#allocation5 + $0x70] sm:$0xff]
    %v62 = vld [vmem:[#allocation5 + $0x78] sm:$0xff]
    %v63 = vld [vmem:[%s2] sm:$0x1]
    %v64 = vld [vmem:[%s2 + $0x1] sm:$0x1]
    %v65 = vld [vmem:[%s2 + $0x2] sm:$0x1]
    %v66 = vld [vmem:[%s2 + $0x3] sm:$0x1]
    %v71 = vlaneseq
    %v72 = vshrl.u32 %v71, 7
    %v73 = vsub.s32 0, %v72
    %v74 = vrot.slane %v63, %v73
    %v75 = vlaneseq
    %v76 = vshrl.u32 %v75, 7
    %v77 = vsub.s32 0, %v76
    %v78 = vrot.slane %v64, %v77
    %v79 = vlaneseq
    %v80 = vshrl.u32 %v79, 7
    %v81 = vsub.s32 0, %v80
    %v82 = vrot.slane %v65, %v81
    %v83 = vlaneseq
    %v84 = vshrl.u32 %v83, 7
    %v85 = vsub.s32 0, %v84
    %v86 = vrot.slane %v66, %v85
    %vm91 = vcmask 261120
    %v93 = vsel %vm91, %v43, 0
    %95 = vmatprep.subr.mxu0 0.0
    %v96 = vand.u32 %v47, 4294901760
    %97 = vmatpush1.msra.mxu0 %v96
    %98 = vmatprep.subr.mxu0 0.0
    %v99 = vand.u32 %v48, 4294901760
    %100 = vmatpush1.msra.mxu0 %v99
    %101 = vmatprep.subr.mxu0 0.0
    %v102 = vand.u32 %v49, 4294901760
    %103 = vmatpush1.msra.mxu0 %v102
    %104 = vmatprep.subr.mxu0 0.0
    %v105 = vand.u32 %v50, 4294901760
    %106 = vmatpush1.msra.mxu0 %v105
    %107 = vmatprep.subr.mxu0 0.0
    %108 = vmatpush1.msra.mxu0 0.0
    %109 = vmatprep.subr.mxu0 0.0
    %110 = vmatpush1.msra.mxu0 0.0
    %111 = vmatprep.subr.mxu0 0.0
    %112 = vmatpush1.msra.mxu0 0.0
    %113 = vmatprep.subr.mxu0 0.0
    %114 = vmatpush1.msra.mxu0 0.0
    %115 = vmatprep.subr.mxu0 0.0
    %116 = vmatpush1.msra.mxu0 0.0
    %117 = vmatprep.subr.mxu0 0.0
    %118 = vmatpush1.msra.mxu0 0.0
    %119 = vmatprep.subr.mxu0 0.0
    %120 = vmatpush1.msra.mxu0 0.0
    %121 = vmatprep.subr.mxu0 0.0
    %122 = vmatpush1.msra.mxu0 0.0
    %123 = vmatprep.subr.mxu0 0.0
    %124 = vmatpush1.msra.mxu0 0.0
    %125 = vmatprep.subr.mxu0 0.0
    %126 = vmatpush1.msra.mxu0 0.0
    %127 = vmatprep.subr.mxu0 0.0
    %128 = vmatpush1.msra.mxu0 0.0
    %129 = vmatprep.subr.mxu0 0.0
    %130 = vmatpush1.msra.mxu0 0.0
    %131 = vmatprep.subr.mxu0 0.0
    %132 = vmatpush1.msra.mxu0 0.0
    %133 = vmatprep.subr.mxu0 0.0
    %134 = vmatpush1.msra.mxu0 0.0
    %135 = vmatprep.subr.mxu0 0.0
    %136 = vmatpush1.msra.mxu0 0.0
    %137 = vmatprep.subr.mxu0 0.0
    %138 = vmatpush1.msra.mxu0 0.0
    %139 = vmatprep.subr.mxu0 0.0
    %140 = vmatpush1.msra.mxu0 0.0
    %141 = vmatprep.subr.mxu0 0.0
    %142 = vmatpush1.msra.mxu0 0.0
    %143 = vmatprep.subr.mxu0 0.0
    %144 = vmatpush1.msra.mxu0 0.0
    %145 = vmatprep.subr.mxu0 0.0
    %146 = vmatpush1.msra.mxu0 0.0
    %147 = vmatprep.subr.mxu0 0.0
    %148 = vmatpush1.msra.mxu0 0.0
    %149 = vmatprep.subr.mxu0 0.0
    %150 = vmatpush1.msra.mxu0 0.0
    %151 = vmatprep.subr.mxu0 0.0
    %152 = vmatpush1.msra.mxu0 0.0
    %153 = vmatprep.subr.mxu0 0.0
    %154 = vmatpush1.msra.mxu0 0.0
    %155 = vmatprep.subr.mxu0 0.0
    %156 = vmatpush1.msra.mxu0 0.0
    %157 = vmatprep.subr.mxu0 0.0
    %158 = vmatpush1.msra.mxu0 0.0
    %159 = vmatprep.subr.mxu0 0.0
    %160 = vmatpush1.msra.mxu0 0.0
    %161 = vmatprep.subr.mxu0 0.0
    %162 = vmatpush1.msra.mxu0 0.0
    %163 = vmatprep.mubr.f32.mxu0 0.0
    %v164 = vand.u32 %v93, 4294901760
    %v165 = vsub.f32 %v93, %v164
    %v166 = vand.u32 %v165, 4294901760
    %v167 = vsub.f32 %v165, %v166
    %v168 = vand.u32 %v167, 4294901760
    %169 = vmatmul.mubr.f32.gmra.mrb[0].mxu0 %v168
    %v170 = vpop.f32.mrb[0].mxu0
    %v171 = vadd.f32 %v74, %v170
    %v172 = vpop.f32.mrb[0].mxu0
    %173 = vdwg.mxu0
    %174 = vmatprep.subr.mxu0 0.0
    %v175 = vand.u32 %v47, 4294901760
    %v176 = vsub.f32 %v47, %v175
    %v177 = vand.u32 %v176, 4294901760
    %v178 = vsub.f32 %v176, %v177
    %v179 = vand.u32 %v178, 4294901760
    %180 = vmatpush1.msra.mxu0 %v179
    %181 = vmatprep.subr.mxu0 0.0
    %v182 = vand.u32 %v48, 4294901760
    %v183 = vsub.f32 %v48, %v182
    %v184 = vand.u32 %v183, 4294901760
    %v185 = vsub.f32 %v183, %v184
    %v186 = vand.u32 %v185, 4294901760
    %187 = vmatpush1.msra.mxu0 %v186
    %188 = vmatprep.subr.mxu0 0.0
    %v189 = vand.u32 %v49, 4294901760
    %v190 = vsub.f32 %v49, %v189
    %v191 = vand.u32 %v190, 4294901760
    %v192 = vsub.f32 %v190, %v191
    %v193 = vand.u32 %v192, 4294901760
    %194 = vmatpush1.msra.mxu0 %v193
    %195 = vmatprep.subr.mxu0 0.0
    %v196 = vand.u32 %v50, 4294901760
    %v197 = vsub.f32 %v50, %v196
    %v198 = vand.u32 %v197, 4294901760
    %v199 = vsub.f32 %v197, %v198
    %v200 = vand.u32 %v199, 4294901760
    %201 = vmatpush1.msra.mxu0 %v200
    %202 = vmatprep.subr.mxu0 0.0
    %203 = vmatpush1.msra.mxu0 0.0
    %204 = vmatprep.subr.mxu0 0.0
    %205 = vmatpush1.msra.mxu0 0.0
    %206 = vmatprep.subr.mxu0 0.0
    %207 = vmatpush1.msra.mxu0 0.0
    %208 = vmatprep.subr.mxu0 0.0
    %209 = vmatpush1.msra.mxu0 0.0
    %210 = vmatprep.subr.mxu0 0.0
    %211 = vmatpush1.msra.mxu0 0.0
    %212 = vmatprep.subr.mxu0 0.0
    %213 = vmatpush1.msra.mxu0 0.0
    %214 = vmatprep.subr.mxu0 0.0
    %215 = vmatpush1.msra.mxu0 0.0
    %216 = vmatprep.subr.mxu0 0.0
    %217 = vmatpush1.msra.mxu0 0.0
    %218 = vmatprep.subr.mxu0 0.0
    %219 = vmatpush1.msra.mxu0 0.0
    %220 = vmatprep.subr.mxu0 0.0
    %221 = vmatpush1.msra.mxu0 0.0
    %222 = vmatprep.subr.mxu0 0.0
    %223 = vmatpush1.msra.mxu0 0.0
    %224 = vmatprep.subr.mxu0 0.0
    %225 = vmatpush1.msra.mxu0 0.0
    %226 = vmatprep.subr.mxu0 0.0
    %227 = vmatpush1.msra.mxu0 0.0
    %228 = vmatprep.subr.mxu0 0.0
    %229 = vmatpush1.msra.mxu0 0.0
    %230 = vmatprep.subr.mxu0 0.0
    %231 = vmatpush1.msra.mxu0 0.0
    %232 = vmatprep.subr.mxu0 0.0
    %233 = vmatpush1.msra.mxu0 0.0
    %234 = vmatprep.subr.mxu0 0.0
    %235 = vmatpush1.msra.mxu0 0.0
    %236 = vmatprep.subr.mxu0 0.0
    %237 = vmatpush1.msra.mxu0 0.0
    %238 = vmatprep.subr.mxu0 0.0
    %239 = vmatpush1.msra.mxu0 0.0
    %240 = vmatprep.subr.mxu0 0.0
    %241 = vmatpush1.msra.mxu0 0.0
    %242 = vmatprep.subr.mxu0 0.0
    %243 = vmatpush1.msra.mxu0 0.0
    %244 = vmatprep.subr.mxu0 0.0
    %245 = vmatpush1.msra.mxu0 0.0
    %246 = vmatprep.subr.mxu0 0.0
    %247 = vmatpush1.msra.mxu0 0.0
    %248 = vmatprep.subr.mxu0 0.0
    %249 = vmatpush1.msra.mxu0 0.0
    %250 = vmatprep.subr.mxu0 0.0
    %251 = vmatpush1.msra.mxu0 0.0
    %252 = vmatprep.subr.mxu0 0.0
    %253 = vmatpush1.msra.mxu0 0.0
    %254 = vmatprep.subr.mxu0 0.0
    %255 = vmatpush1.msra.mxu0 0.0
    %256 = vmatprep.subr.mxu0 0.0
    %257 = vmatpush1.msra.mxu0 0.0
    %258 = vmatprep.mubr.f32.mxu0 0.0
    %v259 = vand.u32 %v93, 4294901760
    %260 = vmatmul.mubr.f32.gmra.mrb[0].mxu0 %v259
    %v261 = vpop.f32.mrb[0].mxu0
    %v262 = vadd.f32 %v171, %v261
    %v263 = vpop.f32.mrb[0].mxu0
    %264 = vdwg.mxu0
    %265 = vmatprep.subr.mxu0 0.0
    %v266 = vand.u32 %v47, 4294901760
    %v267 = vsub.f32 %v47, %v266
    %268 = vmatpush1.msra.mxu0 %v267
    %269 = vmatprep.subr.mxu0 0.0
    %v270 = vand.u32 %v48, 4294901760
    %v271 = vsub.f32 %v48, %v270
    %272 = vmatpush1.msra.mxu0 %v271
    %273 = vmatprep.subr.mxu0 0.0
    %v274 = vand.u32 %v49, 4294901760
    %v275 = vsub.f32 %v49, %v274
    %276 = vmatpush1.msra.mxu0 %v275
    %277 = vmatprep.subr.mxu0 0.0
    %v278 = vand.u32 %v50, 4294901760
    %v279 = vsub.f32 %v50, %v278
    %280 = vmatpush1.msra.mxu0 %v279
    %281 = vmatprep.subr.mxu0 0.0
    %282 = vmatpush1.msra.mxu0 0.0
    %283 = vmatprep.subr.mxu0 0.0
    %284 = vmatpush1.msra.mxu0 0.0
    %285 = vmatprep.subr.mxu0 0.0
    %286 = vmatpush1.msra.mxu0 0.0
    %287 = vmatprep.subr.mxu0 0.0
    %288 = vmatpush1.msra.mxu0 0.0
    %289 = vmatprep.subr.mxu0 0.0
    %290 = vmatpush1.msra.mxu0 0.0
    %291 = vmatprep.subr.mxu0 0.0
    %292 = vmatpush1.msra.mxu0 0.0
    %293 = vmatprep.subr.mxu0 0.0
    %294 = vmatpush1.msra.mxu0 0.0
    %295 = vmatprep.subr.mxu0 0.0
    %296 = vmatpush1.msra.mxu0 0.0
    %297 = vmatprep.subr.mxu0 0.0
    %298 = vmatpush1.msra.mxu0 0.0
    %299 = vmatprep.subr.mxu0 0.0
    %300 = vmatpush1.msra.mxu0 0.0
    %301 = vmatprep.subr.mxu0 0.0
    %302 = vmatpush1.msra.mxu0 0.0
    %303 = vmatprep.subr.mxu0 0.0
    %304 = vmatpush1.msra.mxu0 0.0
    %305 = vmatprep.subr.mxu0 0.0
    %306 = vmatpush1.msra.mxu0 0.0
    %307 = vmatprep.subr.mxu0 0.0
    %308 = vmatpush1.msra.mxu0 0.0
    %309 = vmatprep.subr.mxu0 0.0
    %310 = vmatpush1.msra.mxu0 0.0
    %311 = vmatprep.subr.mxu0 0.0
    %312 = vmatpush1.msra.mxu0 0.0
    %313 = vmatprep.subr.mxu0 0.0
    %314 = vmatpush1.msra.mxu0 0.0
    %315 = vmatprep.subr.mxu0 0.0
    %316 = vmatpush1.msra.mxu0 0.0
    %317 = vmatprep.subr.mxu0 0.0
    %318 = vmatpush1.msra.mxu0 0.0
    %319 = vmatprep.subr.mxu0 0.0
    %320 = vmatpush1.msra.mxu0 0.0
    %321 = vmatprep.subr.mxu0 0.0
    %322 = vmatpush1.msra.mxu0 0.0
    %323 = vmatprep.subr.mxu0 0.0
    %324 = vmatpush1.msra.mxu0 0.0
    %325 = vmatprep.subr.mxu0 0.0
    %326 = vmatpush1.msra.mxu0 0.0
    %327 = vmatprep.subr.mxu0 0.0
    %328 = vmatpush1.msra.mxu0 0.0
    %329 = vmatprep.subr.mxu0 0.0
    %330 = vmatpush1.msra.mxu0 0.0
    %331 = vmatprep.subr.mxu0 0.0
    %332 = vmatpush1.msra.mxu0 0.0
    %333 = vmatprep.subr.mxu0 0.0
    %334 = vmatpush1.msra.mxu0 0.0
    %335 = vmatprep.subr.mxu0 0.0
    %336 = vmatpush1.msra.mxu0 0.0
    %337 = vmatprep.mubr.f32.mxu0 0.0
    %v338 = vand.u32 %v93, 4294901760
    %v339 = vsub.f32 %v93, %v338
    %340 = vmatmul.mubr.f32.gmra.mrb[0].mxu0 %v339
    %v341 = vpop.f32.mrb[0].mxu0
    %v342 = vadd.f32 %v262, %v341
    %v343 = vpop.f32.mrb[0].mxu0
    %344 = vdwg.mxu0
    %345 = vmatprep.subr.mxu0 0.0
    %v346 = vand.u32 %v47, 4294901760
    %347 = vmatpush1.msra.mxu0 %v346
    %348 = vmatprep.subr.mxu0 0.0
    %v349 = vand.u32 %v48, 4294901760
    %350 = vmatpush1.msra.mxu0 %v349
    %351 = vmatprep.subr.mxu0 0.0
    %v352 = vand.u32 %v49, 4294901760
    %353 = vmatpush1.msra.mxu0 %v352
    %354 = vmatprep.subr.mxu0 0.0
    %v355 = vand.u32 %v50, 4294901760
    %356 = vmatpush1.msra.mxu0 %v355
    %357 = vmatprep.subr.mxu0 0.0
    %358 = vmatpush1.msra.mxu0 0.0
    %359 = vmatprep.subr.mxu0 0.0
    %360 = vmatpush1.msra.mxu0 0.0
    %361 = vmatprep.subr.mxu0 0.0
    %362 = vmatpush1.msra.mxu0 0.0
    %363 = vmatprep.subr.mxu0 0.0
    %364 = vmatpush1.msra.mxu0 0.0
    %365 = vmatprep.subr.mxu0 0.0
    %366 = vmatpush1.msra.mxu0 0.0
    %367 = vmatprep.subr.mxu0 0.0
    %368 = vmatpush1.msra.mxu0 0.0
    %369 = vmatprep.subr.mxu0 0.0
    %370 = vmatpush1.msra.mxu0 0.0
    %371 = vmatprep.subr.mxu0 0.0
    %372 = vmatpush1.msra.mxu0 0.0
    %373 = vmatprep.subr.mxu0 0.0
    %374 = vmatpush1.msra.mxu0 0.0
    %375 = vmatprep.subr.mxu0 0.0
    %376 = vmatpush1.msra.mxu0 0.0
    %377 = vmatprep.subr.mxu0 0.0
    %378 = vmatpush1.msra.mxu0 0.0
    %379 = vmatprep.subr.mxu0 0.0
    %380 = vmatpush1.msra.mxu0 0.0
    %381 = vmatprep.subr.mxu0 0.0
    %382 = vmatpush1.msra.mxu0 0.0
    %383 = vmatprep.subr.mxu0 0.0
    %384 = vmatpush1.msra.mxu0 0.0
    %385 = vmatprep.subr.mxu0 0.0
    %386 = vmatpush1.msra.mxu0 0.0
    %387 = vmatprep.subr.mxu0 0.0
    %388 = vmatpush1.msra.mxu0 0.0
    %389 = vmatprep.subr.mxu0 0.0
    %390 = vmatpush1.msra.mxu0 0.0
    %391 = vmatprep.subr.mxu0 0.0
    %392 = vmatpush1.msra.mxu0 0.0
    %393 = vmatprep.subr.mxu0 0.0
    %394 = vmatpush1.msra.mxu0 0.0
    %395 = vmatprep.subr.mxu0 0.0
    %396 = vmatpush1.msra.mxu0 0.0
    %397 = vmatprep.subr.mxu0 0.0
    %398 = vmatpush1.msra.mxu0 0.0
    %399 = vmatprep.subr.mxu0 0.0
    %400 = vmatpush1.msra.mxu0 0.0
    %401 = vmatprep.subr.mxu0 0.0
    %402 = vmatpush1.msra.mxu0 0.0
    %403 = vmatprep.subr.mxu0 0.0
    %404 = vmatpush1.msra.mxu0 0.0
    %405 = vmatprep.subr.mxu0 0.0
    %406 = vmatpush1.msra.mxu0 0.0
    %407 = vmatprep.subr.mxu0 0.0
    %408 = vmatpush1.msra.mxu0 0.0
    %409 = vmatprep.subr.mxu0 0.0
    %410 = vmatpush1.msra.mxu0 0.0
    %411 = vmatprep.subr.mxu0 0.0
    %412 = vmatpush1.msra.mxu0 0.0
    %413 = vmatprep.mubr.f32.mxu0 0.0
    %v414 = vand.u32 %v93, 4294901760
    %v415 = vsub.f32 %v93, %v414
    %v416 = vand.u32 %v415, 4294901760
    %417 = vmatmul.mubr.f32.gmra.mrb[0].mxu0 %v416
    %v418 = vpop.f32.mrb[0].mxu0
    %v419 = vadd.f32 %v342, %v418
    %v420 = vpop.f32.mrb[0].mxu0
    %421 = vdwg.mxu0
    %422 = vmatprep.subr.mxu0 0.0
    %v423 = vand.u32 %v47, 4294901760
    %v424 = vsub.f32 %v47, %v423
    %v425 = vand.u32 %v424, 4294901760
    %426 = vmatpush1.msra.mxu0 %v425
    %427 = vmatprep.subr.mxu0 0.0
    %v428 = vand.u32 %v48, 4294901760
    %v429 = vsub.f32 %v48, %v428
    %v430 = vand.u32 %v429, 4294901760
    %431 = vmatpush1.msra.mxu0 %v430
    %432 = vmatprep.subr.mxu0 0.0
    %v433 = vand.u32 %v49, 4294901760
    %v434 = vsub.f32 %v49, %v433
    %v435 = vand.u32 %v434, 4294901760
    %436 = vmatpush1.msra.mxu0 %v435
    %437 = vmatprep.subr.mxu0 0.0
    %v438 = vand.u32 %v50, 4294901760
    %v439 = vsub.f32 %v50, %v438
    %v440 = vand.u32 %v439, 4294901760
    %441 = vmatpush1.msra.mxu0 %v440
    %442 = vmatprep.subr.mxu0 0.0
    %443 = vmatpush1.msra.mxu0 0.0
    %444 = vmatprep.subr.mxu0 0.0
    %445 = vmatpush1.msra.mxu0 0.0
    %446 = vmatprep.subr.mxu0 0.0
    %447 = vmatpush1.msra.mxu0 0.0
    %448 = vmatprep.subr.mxu0 0.0
    %449 = vmatpush1.msra.mxu0 0.0
    %450 = vmatprep.subr.mxu0 0.0
    %451 = vmatpush1.msra.mxu0 0.0
    %452 = vmatprep.subr.mxu0 0.0
    %453 = vmatpush1.msra.mxu0 0.0
    %454 = vmatprep.subr.mxu0 0.0
    %455 = vmatpush1.msra.mxu0 0.0
    %456 = vmatprep.subr.mxu0 0.0
    %457 = vmatpush1.msra.mxu0 0.0
    %458 = vmatprep.subr.mxu0 0.0
    %459 = vmatpush1.msra.mxu0 0.0
    %460 = vmatprep.subr.mxu0 0.0
    %461 = vmatpush1.msra.mxu0 0.0
    %462 = vmatprep.subr.mxu0 0.0
    %463 = vmatpush1.msra.mxu0 0.0
    %464 = vmatprep.subr.mxu0 0.0
    %465 = vmatpush1.msra.mxu0 0.0
    %466 = vmatprep.subr.mxu0 0.0
    %467 = vmatpush1.msra.mxu0 0.0
    %468 = vmatprep.subr.mxu0 0.0
    %469 = vmatpush1.msra.mxu0 0.0
    %470 = vmatprep.subr.mxu0 0.0
    %471 = vmatpush1.msra.mxu0 0.0
    %472 = vmatprep.subr.mxu0 0.0
    %473 = vmatpush1.msra.mxu0 0.0
    %474 = vmatprep.subr.mxu0 0.0
    %475 = vmatpush1.msra.mxu0 0.0
    %476 = vmatprep.subr.mxu0 0.0
    %477 = vmatpush1.msra.mxu0 0.0
    %478 = vmatprep.subr.mxu0 0.0
    %479 = vmatpush1.msra.mxu0 0.0
    %480 = vmatprep.subr.mxu0 0.0
    %481 = vmatpush1.msra.mxu0 0.0
    %482 = vmatprep.subr.mxu0 0.0
    %483 = vmatpush1.msra.mxu0 0.0
    %484 = vmatprep.subr.mxu0 0.0
    %485 = vmatpush1.msra.mxu0 0.0
    %486 = vmatprep.subr.mxu0 0.0
    %487 = vmatpush1.msra.mxu0 0.0
    %488 = vmatprep.subr.mxu0 0.0
    %489 = vmatpush1.msra.mxu0 0.0
    %490 = vmatprep.subr.mxu0 0.0
    %491 = vmatpush1.msra.mxu0 0.0
    %492 = vmatprep.subr.mxu0 0.0
    %493 = vmatpush1.msra.mxu0 0.0
    %494 = vmatprep.subr.mxu0 0.0
    %495 = vmatpush1.msra.mxu0 0.0
    %496 = vmatprep.subr.mxu0 0.0
    %497 = vmatpush1.msra.mxu0 0.0
    %498 = vmatprep.mubr.f32.mxu0 0.0
    %v499 = vand.u32 %v93, 4294901760
    %500 = vmatmul.mubr.f32.gmra.mrb[0].mxu0 %v499
    %v501 = vpop.f32.mrb[0].mxu0
    %v502 = vadd.f32 %v419, %v501
    %v503 = vpop.f32.mrb[0].mxu0
    %504 = vdwg.mxu0
    %505 = vmatprep.subr.mxu0 0.0
    %v506 = vand.u32 %v47, 4294901760
    %507 = vmatpush1.msra.mxu0 %v506
    %508 = vmatprep.subr.mxu0 0.0
    %v509 = vand.u32 %v48, 4294901760
    %510 = vmatpush1.msra.mxu0 %v509
    %511 = vmatprep.subr.mxu0 0.0
    %v512 = vand.u32 %v49, 4294901760
    %513 = vmatpush1.msra.mxu0 %v512
    %514 = vmatprep.subr.mxu0 0.0
    %v515 = vand.u32 %v50, 4294901760
    %516 = vmatpush1.msra.mxu0 %v515
    %517 = vmatprep.subr.mxu0 0.0
    %518 = vmatpush1.msra.mxu0 0.0
    %519 = vmatprep.subr.mxu0 0.0
    %520 = vmatpush1.msra.mxu0 0.0
    %521 = vmatprep.subr.mxu0 0.0
    %522 = vmatpush1.msra.mxu0 0.0
    %523 = vmatprep.subr.mxu0 0.0
    %524 = vmatpush1.msra.mxu0 0.0
    %525 = vmatprep.subr.mxu0 0.0
    %526 = vmatpush1.msra.mxu0 0.0
    %527 = vmatprep.subr.mxu0 0.0
    %528 = vmatpush1.msra.mxu0 0.0
    %529 = vmatprep.subr.mxu0 0.0
    %530 = vmatpush1.msra.mxu0 0.0
    %531 = vmatprep.subr.mxu0 0.0
    %532 = vmatpush1.msra.mxu0 0.0
    %533 = vmatprep.subr.mxu0 0.0
    %534 = vmatpush1.msra.mxu0 0.0
    %535 = vmatprep.subr.mxu0 0.0
    %536 = vmatpush1.msra.mxu0 0.0
    %537 = vmatprep.subr.mxu0 0.0
    %538 = vmatpush1.msra.mxu0 0.0
    %539 = vmatprep.subr.mxu0 0.0
    %540 = vmatpush1.msra.mxu0 0.0
    %541 = vmatprep.subr.mxu0 0.0
    %542 = vmatpush1.msra.mxu0 0.0
    %543 = vmatprep.subr.mxu0 0.0
    %544 = vmatpush1.msra.mxu0 0.0
    %545 = vmatprep.subr.mxu0 0.0
    %546 = vmatpush1.msra.mxu0 0.0
    %547 = vmatprep.subr.mxu0 0.0
    %548 = vmatpush1.msra.mxu0 0.0
    %549 = vmatprep.subr.mxu0 0.0
    %550 = vmatpush1.msra.mxu0 0.0
    %551 = vmatprep.subr.mxu0 0.0
    %552 = vmatpush1.msra.mxu0 0.0
    %553 = vmatprep.subr.mxu0 0.0
    %554 = vmatpush1.msra.mxu0 0.0
    %555 = vmatprep.subr.mxu0 0.0
    %556 = vmatpush1.msra.mxu0 0.0
    %557 = vmatprep.subr.mxu0 0.0
    %558 = vmatpush1.msra.mxu0 0.0
    %559 = vmatprep.subr.mxu0 0.0
    %560 = vmatpush1.msra.mxu0 0.0
    %561 = vmatprep.subr.mxu0 0.0
    %562 = vmatpush1.msra.mxu0 0.0
    %563 = vmatprep.subr.mxu0 0.0
    %564 = vmatpush1.msra.mxu0 0.0
    %565 = vmatprep.subr.mxu0 0.0
    %566 = vmatpush1.msra.mxu0 0.0
    %567 = vmatprep.subr.mxu0 0.0
    %568 = vmatpush1.msra.mxu0 0.0
    %569 = vmatprep.subr.mxu0 0.0
    %570 = vmatpush1.msra.mxu0 0.0
    %571 = vmatprep.subr.mxu0 0.0
    %572 = vmatpush1.msra.mxu0 0.0
    %573 = vmatprep.mubr.f32.mxu0 0.0
    %v574 = vand.u32 %v93, 4294901760
    %575 = vmatmul.mubr.f32.gmra.mrb[0].mxu0 %v574
    %v576 = vpop.f32.mrb[0].mxu0
    %v577 = vadd.f32 %v502, %v576
    %v578 = vpop.f32.mrb[0].mxu0
    %579 = vdwg.mxu0
    %v581 = vsel %vm91, %v44, 0
    %583 = vmatprep.subr.mxu0 0.0
    %v584 = vand.u32 %v51, 4294901760
    %585 = vmatpush1.msra.mxu0 %v584
    %586 = vmatprep.subr.mxu0 0.0
    %v587 = vand.u32 %v52, 4294901760
    %588 = vmatpush1.msra.mxu0 %v587
    %589 = vmatprep.subr.mxu0 0.0
    %v590 = vand.u32 %v53, 4294901760
    %591 = vmatpush1.msra.mxu0 %v590
    %592 = vmatprep.subr.mxu0 0.0
    %v593 = vand.u32 %v54, 4294901760
    %594 = vmatpush1.msra.mxu0 %v593
    %595 = vmatprep.subr.mxu0 0.0
    %596 = vmatpush1.msra.mxu0 0.0
    %597 = vmatprep.subr.mxu0 0.0
    %598 = vmatpush1.msra.mxu0 0.0
    %599 = vmatprep.subr.mxu0 0.0
    %600 = vmatpush1.msra.mxu0 0.0
    %601 = vmatprep.subr.mxu0 0.0
    %602 = vmatpush1.msra.mxu0 0.0
    %603 = vmatprep.subr.mxu0 0.0
    %604 = vmatpush1.msra.mxu0 0.0
    %605 = vmatprep.subr.mxu0 0.0
    %606 = vmatpush1.msra.mxu0 0.0
    %607 = vmatprep.subr.mxu0 0.0
    %608 = vmatpush1.msra.mxu0 0.0
    %609 = vmatprep.subr.mxu0 0.0
    %610 = vmatpush1.msra.mxu0 0.0
    %611 = vmatprep.subr.mxu0 0.0
    %612 = vmatpush1.msra.mxu0 0.0
    %613 = vmatprep.subr.mxu0 0.0
    %614 = vmatpush1.msra.mxu0 0.0
    %615 = vmatprep.subr.mxu0 0.0
    %616 = vmatpush1.msra.mxu0 0.0
    %617 = vmatprep.subr.mxu0 0.0
    %618 = vmatpush1.msra.mxu0 0.0
    %619 = vmatprep.subr.mxu0 0.0
    %620 = vmatpush1.msra.mxu0 0.0
    %621 = vmatprep.subr.mxu0 0.0
    %622 = vmatpush1.msra.mxu0 0.0
    %623 = vmatprep.subr.mxu0 0.0
    %624 = vmatpush1.msra.mxu0 0.0
    %625 = vmatprep.subr.mxu0 0.0
    %626 = vmatpush1.msra.mxu0 0.0
    %627 = vmatprep.subr.mxu0 0.0
    %628 = vmatpush1.msra.mxu0 0.0
    %629 = vmatprep.subr.mxu0 0.0
    %630 = vmatpush1.msra.mxu0 0.0
    %631 = vmatprep.subr.mxu0 0.0
    %632 = vmatpush1.msra.mxu0 0.0
    %633 = vmatprep.subr.mxu0 0.0
    %634 = vmatpush1.msra.mxu0 0.0
    %635 = vmatprep.subr.mxu0 0.0
    %636 = vmatpush1.msra.mxu0 0.0
    %637 = vmatprep.subr.mxu0 0.0
    %638 = vmatpush1.msra.mxu0 0.0
    %639 = vmatprep.subr.mxu0 0.0
    %640 = vmatpush1.msra.mxu0 0.0
    %641 = vmatprep.subr.mxu0 0.0
    %642 = vmatpush1.msra.mxu0 0.0
    %643 = vmatprep.subr.mxu0 0.0
    %644 = vmatpush1.msra.mxu0 0.0
    %645 = vmatprep.subr.mxu0 0.0
    %646 = vmatpush1.msra.mxu0 0.0
    %647 = vmatprep.subr.mxu0 0.0
    %648 = vmatpush1.msra.mxu0 0.0
    %649 = vmatprep.subr.mxu0 0.0
    %650 = vmatpush1.msra.mxu0 0.0
    %651 = vmatprep.mubr.f32.mxu0 0.0
    %v652 = vand.u32 %v581, 4294901760
    %v653 = vsub.f32 %v581, %v652
    %v654 = vand.u32 %v653, 4294901760
    %v655 = vsub.f32 %v653, %v654
    %v656 = vand.u32 %v655, 4294901760
    %657 = vmatmul.mubr.f32.gmra.mrb[0].mxu0 %v656
    %v658 = vpop.f32.mrb[0].mxu0
    %v659 = vadd.f32 %v78, %v658
    %v660 = vpop.f32.mrb[0].mxu0
    %661 = vdwg.mxu0
    %662 = vmatprep.subr.mxu0 0.0
    %v663 = vand.u32 %v51, 4294901760
    %v664 = vsub.f32 %v51, %v663
    %v665 = vand.u32 %v664, 4294901760
    %v666 = vsub.f32 %v664, %v665
    %v667 = vand.u32 %v666, 4294901760
    %668 = vmatpush1.msra.mxu0 %v667
    %669 = vmatprep.subr.mxu0 0.0
    %v670 = vand.u32 %v52, 4294901760
    %v671 = vsub.f32 %v52, %v670
    %v672 = vand.u32 %v671, 4294901760
    %v673 = vsub.f32 %v671, %v672
    %v674 = vand.u32 %v673, 4294901760
    %675 = vmatpush1.msra.mxu0 %v674
    %676 = vmatprep.subr.mxu0 0.0
    %v677 = vand.u32 %v53, 4294901760
    %v678 = vsub.f32 %v53, %v677
    %v679 = vand.u32 %v678, 4294901760
    %v680 = vsub.f32 %v678, %v679
    %v681 = vand.u32 %v680, 4294901760
    %682 = vmatpush1.msra.mxu0 %v681
    %683 = vmatprep.subr.mxu0 0.0
    %v684 = vand.u32 %v54, 4294901760
    %v685 = vsub.f32 %v54, %v684
    %v686 = vand.u32 %v685, 4294901760
    %v687 = vsub.f32 %v685, %v686
    %v688 = vand.u32 %v687, 4294901760
    %689 = vmatpush1.msra.mxu0 %v688
    %690 = vmatprep.subr.mxu0 0.0
    %691 = vmatpush1.msra.mxu0 0.0
    %692 = vmatprep.subr.mxu0 0.0
    %693 = vmatpush1.msra.mxu0 0.0
    %694 = vmatprep.subr.mxu0 0.0
    %695 = vmatpush1.msra.mxu0 0.0
    %696 = vmatprep.subr.mxu0 0.0
    %697 = vmatpush1.msra.mxu0 0.0
    %698 = vmatprep.subr.mxu0 0.0
    %699 = vmatpush1.msra.mxu0 0.0
    %700 = vmatprep.subr.mxu0 0.0
    %701 = vmatpush1.msra.mxu0 0.0
    %702 = vmatprep.subr.mxu0 0.0
    %703 = vmatpush1.msra.mxu0 0.0
    %704 = vmatprep.subr.mxu0 0.0
    %705 = vmatpush1.msra.mxu0 0.0
    %706 = vmatprep.subr.mxu0 0.0
    %707 = vmatpush1.msra.mxu0 0.0
    %708 = vmatprep.subr.mxu0 0.0
    %709 = vmatpush1.msra.mxu0 0.0
    %710 = vmatprep.subr.mxu0 0.0
    %711 = vmatpush1.msra.mxu0 0.0
    %712 = vmatprep.subr.mxu0 0.0
    %713 = vmatpush1.msra.mxu0 0.0
    %714 = vmatprep.subr.mxu0 0.0
    %715 = vmatpush1.msra.mxu0 0.0
    %716 = vmatprep.subr.mxu0 0.0
    %717 = vmatpush1.msra.mxu0 0.0
    %718 = vmatprep.subr.mxu0 0.0
    %719 = vmatpush1.msra.mxu0 0.0
    %720 = vmatprep.subr.mxu0 0.0
    %721 = vmatpush1.msra.mxu0 0.0
    %722 = vmatprep.subr.mxu0 0.0
    %723 = vmatpush1.msra.mxu0 0.0
    %724 = vmatprep.subr.mxu0 0.0
    %725 = vmatpush1.msra.mxu0 0.0
    %726 = vmatprep.subr.mxu0 0.0
    %727 = vmatpush1.msra.mxu0 0.0
    %728 = vmatprep.subr.mxu0 0.0
    %729 = vmatpush1.msra.mxu0 0.0
    %730 = vmatprep.subr.mxu0 0.0
    %731 = vmatpush1.msra.mxu0 0.0
    %732 = vmatprep.subr.mxu0 0.0
    %733 = vmatpush1.msra.mxu0 0.0
    %734 = vmatprep.subr.mxu0 0.0
    %735 = vmatpush1.msra.mxu0 0.0
    %736 = vmatprep.subr.mxu0 0.0
    %737 = vmatpush1.msra.mxu0 0.0
    %738 = vmatprep.subr.mxu0 0.0
    %739 = vmatpush1.msra.mxu0 0.0
    %740 = vmatprep.subr.mxu0 0.0
    %741 = vmatpush1.msra.mxu0 0.0
    %742 = vmatprep.subr.mxu0 0.0
    %743 = vmatpush1.msra.mxu0 0.0
    %744 = vmatprep.subr.mxu0 0.0
    %745 = vmatpush1.msra.mxu0 0.0
    %746 = vmatprep.mubr.f32.mxu0 0.0
    %v747 = vand.u32 %v581, 4294901760
    %748 = vmatmul.mubr.f32.gmra.mrb[0].mxu0 %v747
    %v749 = vpop.f32.mrb[0].mxu0
    %v750 = vadd.f32 %v659, %v749
    %v751 = vpop.f32.mrb[0].mxu0
    %752 = vdwg.mxu0
    %753 = vmatprep.subr.mxu0 0.0
    %v754 = vand.u32 %v51, 4294901760
    %v755 = vsub.f32 %v51, %v754
    %756 = vmatpush1.msra.mxu0 %v755
    %757 = vmatprep.subr.mxu0 0.0
    %v758 = vand.u32 %v52, 4294901760
    %v759 = vsub.f32 %v52, %v758
    %760 = vmatpush1.msra.mxu0 %v759
    %761 = vmatprep.subr.mxu0 0.0
    %v762 = vand.u32 %v53, 4294901760
    %v763 = vsub.f32 %v53, %v762
    %764 = vmatpush1.msra.mxu0 %v763
    %765 = vmatprep.subr.mxu0 0.0
    %v766 = vand.u32 %v54, 4294901760
    %v767 = vsub.f32 %v54, %v766
    %768 = vmatpush1.msra.mxu0 %v767
    %769 = vmatprep.subr.mxu0 0.0
    %770 = vmatpush1.msra.mxu0 0.0
    %771 = vmatprep.subr.mxu0 0.0
    %772 = vmatpush1.msra.mxu0 0.0
    %773 = vmatprep.subr.mxu0 0.0
    %774 = vmatpush1.msra.mxu0 0.0
    %775 = vmatprep.subr.mxu0 0.0
    %776 = vmatpush1.msra.mxu0 0.0
    %777 = vmatprep.subr.mxu0 0.0
    %778 = vmatpush1.msra.mxu0 0.0
    %779 = vmatprep.subr.mxu0 0.0
    %780 = vmatpush1.msra.mxu0 0.0
    %781 = vmatprep.subr.mxu0 0.0
    %782 = vmatpush1.msra.mxu0 0.0
    %783 = vmatprep.subr.mxu0 0.0
    %784 = vmatpush1.msra.mxu0 0.0
    %785 = vmatprep.subr.mxu0 0.0
    %786 = vmatpush1.msra.mxu0 0.0
    %787 = vmatprep.subr.mxu0 0.0
    %788 = vmatpush1.msra.mxu0 0.0
    %789 = vmatprep.subr.mxu0 0.0
    %790 = vmatpush1.msra.mxu0 0.0
    %791 = vmatprep.subr.mxu0 0.0
    %792 = vmatpush1.msra.mxu0 0.0
    %793 = vmatprep.subr.mxu0 0.0
    %794 = vmatpush1.msra.mxu0 0.0
    %795 = vmatprep.subr.mxu0 0.0
    %796 = vmatpush1.msra.mxu0 0.0
    %797 = vmatprep.subr.mxu0 0.0
    %798 = vmatpush1.msra.mxu0 0.0
    %799 = vmatprep.subr.mxu0 0.0
    %800 = vmatpush1.msra.mxu0 0.0
    %801 = vmatprep.subr.mxu0 0.0
    %802 = vmatpush1.msra.mxu0 0.0
    %803 = vmatprep.subr.mxu0 0.0
    %804 = vmatpush1.msra.mxu0 0.0
    %805 = vmatprep.subr.mxu0 0.0
    %806 = vmatpush1.msra.mxu0 0.0
    %807 = vmatprep.subr.mxu0 0.0
    %808 = vmatpush1.msra.mxu0 0.0
    %809 = vmatprep.subr.mxu0 0.0
    %810 = vmatpush1.msra.mxu0 0.0
    %811 = vmatprep.subr.mxu0 0.0
    %812 = vmatpush1.msra.mxu0 0.0
    %813 = vmatprep.subr.mxu0 0.0
    %814 = vmatpush1.msra.mxu0 0.0
    %815 = vmatprep.subr.mxu0 0.0
    %816 = vmatpush1.msra.mxu0 0.0
    %817 = vmatprep.subr.mxu0 0.0
    %818 = vmatpush1.msra.mxu0 0.0
    %819 = vmatprep.subr.mxu0 0.0
    %820 = vmatpush1.msra.mxu0 0.0
    %821 = vmatprep.subr.mxu0 0.0
    %822 = vmatpush1.msra.mxu0 0.0
    %823 = vmatprep.subr.mxu0 0.0
    %824 = vmatpush1.msra.mxu0 0.0
    %825 = vmatprep.mubr.f32.mxu0 0.0
    %v826 = vand.u32 %v581, 4294901760
    %v827 = vsub.f32 %v581, %v826
    %828 = vmatmul.mubr.f32.gmra.mrb[0].mxu0 %v827
    %v829 = vpop.f32.mrb[0].mxu0
    %v830 = vadd.f32 %v750, %v829
    %v831 = vpop.f32.mrb[0].mxu0
    %832 = vdwg.mxu0
    %833 = vmatprep.subr.mxu0 0.0
    %v834 = vand.u32 %v51, 4294901760
    %835 = vmatpush1.msra.mxu0 %v834
    %836 = vmatprep.subr.mxu0 0.0
    %v837 = vand.u32 %v52, 4294901760
    %838 = vmatpush1.msra.mxu0 %v837
    %839 = vmatprep.subr.mxu0 0.0
    %v840 = vand.u32 %v53, 4294901760
    %841 = vmatpush1.msra.mxu0 %v840
    %842 = vmatprep.subr.mxu0 0.0
    %v843 = vand.u32 %v54, 4294901760
    %844 = vmatpush1.msra.mxu0 %v843
    %845 = vmatprep.subr.mxu0 0.0
    %846 = vmatpush1.msra.mxu0 0.0
    %847 = vmatprep.subr.mxu0 0.0
    %848 = vmatpush1.msra.mxu0 0.0
    %849 = vmatprep.subr.mxu0 0.0
    %850 = vmatpush1.msra.mxu0 0.0
    %851 = vmatprep.subr.mxu0 0.0
    %852 = vmatpush1.msra.mxu0 0.0
    %853 = vmatprep.subr.mxu0 0.0
    %854 = vmatpush1.msra.mxu0 0.0
    %855 = vmatprep.subr.mxu0 0.0
    %856 = vmatpush1.msra.mxu0 0.0
    %857 = vmatprep.subr.mxu0 0.0
    %858 = vmatpush1.msra.mxu0 0.0
    %859 = vmatprep.subr.mxu0 0.0
    %860 = vmatpush1.msra.mxu0 0.0
    %861 = vmatprep.subr.mxu0 0.0
    %862 = vmatpush1.msra.mxu0 0.0
    %863 = vmatprep.subr.mxu0 0.0
    %864 = vmatpush1.msra.mxu0 0.0
    %865 = vmatprep.subr.mxu0 0.0
    %866 = vmatpush1.msra.mxu0 0.0
    %867 = vmatprep.subr.mxu0 0.0
    %868 = vmatpush1.msra.mxu0 0.0
    %869 = vmatprep.subr.mxu0 0.0
    %870 = vmatpush1.msra.mxu0 0.0
    %871 = vmatprep.subr.mxu0 0.0
    %872 = vmatpush1.msra.mxu0 0.0
    %873 = vmatprep.subr.mxu0 0.0
    %874 = vmatpush1.msra.mxu0 0.0
    %875 = vmatprep.subr.mxu0 0.0
    %876 = vmatpush1.msra.mxu0 0.0
    %877 = vmatprep.subr.mxu0 0.0
    %878 = vmatpush1.msra.mxu0 0.0
    %879 = vmatprep.subr.mxu0 0.0
    %880 = vmatpush1.msra.mxu0 0.0
    %881 = vmatprep.subr.mxu0 0.0
    %882 = vmatpush1.msra.mxu0 0.0
    %883 = vmatprep.subr.mxu0 0.0
    %884 = vmatpush1.msra.mxu0 0.0
    %885 = vmatprep.subr.mxu0 0.0
    %886 = vmatpush1.msra.mxu0 0.0
    %887 = vmatprep.subr.mxu0 0.0
    %888 = vmatpush1.msra.mxu0 0.0
    %889 = vmatprep.subr.mxu0 0.0
    %890 = vmatpush1.msra.mxu0 0.0
    %891 = vmatprep.subr.mxu0 0.0
    %892 = vmatpush1.msra.mxu0 0.0
    %893 = vmatprep.subr.mxu0 0.0
    %894 = vmatpush1.msra.mxu0 0.0
    %895 = vmatprep.subr.mxu0 0.0
    %896 = vmatpush1.msra.mxu0 0.0
    %897 = vmatprep.subr.mxu0 0.0
    %898 = vmatpush1.msra.mxu0 0.0
    %899 = vmatprep.subr.mxu0 0.0
    %900 = vmatpush1.msra.mxu0 0.0
    %901 = vmatprep.mubr.f32.mxu0 0.0
    %v902 = vand.u32 %v581, 4294901760
    %v903 = vsub.f32 %v581, %v902
    %v904 = vand.u32 %v903, 4294901760
    %905 = vmatmul.mubr.f32.gmra.mrb[0].mxu0 %v904
    %v906 = vpop.f32.mrb[0].mxu0
    %v907 = vadd.f32 %v830, %v906
    %v908 = vpop.f32.mrb[0].mxu0
    %909 = vdwg.mxu0
    %910 = vmatprep.subr.mxu0 0.0
    %v911 = vand.u32 %v51, 4294901760
    %v912 = vsub.f32 %v51, %v911
    %v913 = vand.u32 %v912, 4294901760
    %914 = vmatpush1.msra.mxu0 %v913
    %915 = vmatprep.subr.mxu0 0.0
    %v916 = vand.u32 %v52, 4294901760
    %v917 = vsub.f32 %v52, %v916
    %v918 = vand.u32 %v917, 4294901760
    %919 = vmatpush1.msra.mxu0 %v918
    %920 = vmatprep.subr.mxu0 0.0
    %v921 = vand.u32 %v53, 4294901760
    %v922 = vsub.f32 %v53, %v921
    %v923 = vand.u32 %v922, 4294901760
    %924 = vmatpush1.msra.mxu0 %v923
    %925 = vmatprep.subr.mxu0 0.0
    %v926 = vand.u32 %v54, 4294901760
    %v927 = vsub.f32 %v54, %v926
    %v928 = vand.u32 %v927, 4294901760
    %929 = vmatpush1.msra.mxu0 %v928
    %930 = vmatprep.subr.mxu0 0.0
    %931 = vmatpush1.msra.mxu0 0.0
    %932 = vmatprep.subr.mxu0 0.0
    %933 = vmatpush1.msra.mxu0 0.0
    %934 = vmatprep.subr.mxu0 0.0
    %935 = vmatpush1.msra.mxu0 0.0
    %936 = vmatprep.subr.mxu0 0.0
    %937 = vmatpush1.msra.mxu0 0.0
    %938 = vmatprep.subr.mxu0 0.0
    %939 = vmatpush1.msra.mxu0 0.0
    %940 = vmatprep.subr.mxu0 0.0
    %941 = vmatpush1.msra.mxu0 0.0
    %942 = vmatprep.subr.mxu0 0.0
    %943 = vmatpush1.msra.mxu0 0.0
    %944 = vmatprep.subr.mxu0 0.0
    %945 = vmatpush1.msra.mxu0 0.0
    %946 = vmatprep.subr.mxu0 0.0
    %947 = vmatpush1.msra.mxu0 0.0
    %948 = vmatprep.subr.mxu0 0.0
    %949 = vmatpush1.msra.mxu0 0.0
    %950 = vmatprep.subr.mxu0 0.0
    %951 = vmatpush1.msra.mxu0 0.0
    %952 = vmatprep.subr.mxu0 0.0
    %953 = vmatpush1.msra.mxu0 0.0
    %954 = vmatprep.subr.mxu0 0.0
    %955 = vmatpush1.msra.mxu0 0.0
    %956 = vmatprep.subr.mxu0 0.0
    %957 = vmatpush1.msra.mxu0 0.0
    %958 = vmatprep.subr.mxu0 0.0
    %959 = vmatpush1.msra.mxu0 0.0
    %960 = vmatprep.subr.mxu0 0.0
    %961 = vmatpush1.msra.mxu0 0.0
    %962 = vmatprep.subr.mxu0 0.0
    %963 = vmatpush1.msra.mxu0 0.0
    %964 = vmatprep.subr.mxu0 0.0
    %965 = vmatpush1.msra.mxu0 0.0
    %966 = vmatprep.subr.mxu0 0.0
    %967 = vmatpush1.msra.mxu0 0.0
    %968 = vmatprep.subr.mxu0 0.0
    %969 = vmatpush1.msra.mxu0 0.0
    %970 = vmatprep.subr.mxu0 0.0
    %971 = vmatpush1.msra.mxu0 0.0
    %972 = vmatprep.subr.mxu0 0.0
    %973 = vmatpush1.msra.mxu0 0.0
    %974 = vmatprep.subr.mxu0 0.0
    %975 = vmatpush1.msra.mxu0 0.0
    %976 = vmatprep.subr.mxu0 0.0
    %977 = vmatpush1.msra.mxu0 0.0
    %978 = vmatprep.subr.mxu0 0.0
    %979 = vmatpush1.msra.mxu0 0.0
    %980 = vmatprep.subr.mxu0 0.0
    %981 = vmatpush1.msra.mxu0 0.0
    %982 = vmatprep.subr.mxu0 0.0
    %983 = vmatpush1.msra.mxu0 0.0
    %984 = vmatprep.subr.mxu0 0.0
    %985 = vmatpush1.msra.mxu0 0.0
    %986 = vmatprep.mubr.f32.mxu0 0.0
    %v987 = vand.u32 %v581, 4294901760
    %988 = vmatmul.mubr.f32.gmra.mrb[0].mxu0 %v987
    %v989 = vpop.f32.mrb[0].mxu0
    %v990 = vadd.f32 %v907, %v989
    %v991 = vpop.f32.mrb[0].mxu0
    %992 = vdwg.mxu0
    %993 = vmatprep.subr.mxu0 0.0
    %v994 = vand.u32 %v51, 4294901760
    %995 = vmatpush1.msra.mxu0 %v994
    %996 = vmatprep.subr.mxu0 0.0
    %v997 = vand.u32 %v52, 4294901760
    %998 = vmatpush1.msra.mxu0 %v997
    %999 = vmatprep.subr.mxu0 0.0
    %v1000 = vand.u32 %v53, 4294901760
    %1001 = vmatpush1.msra.mxu0 %v1000
    %1002 = vmatprep.subr.mxu0 0.0
    %v1003 = vand.u32 %v54, 4294901760
    %1004 = vmatpush1.msra.mxu0 %v1003
    %1005 = vmatprep.subr.mxu0 0.0
    %1006 = vmatpush1.msra.mxu0 0.0
    %1007 = vmatprep.subr.mxu0 0.0
    %1008 = vmatpush1.msra.mxu0 0.0
    %1009 = vmatprep.subr.mxu0 0.0
    %1010 = vmatpush1.msra.mxu0 0.0
    %1011 = vmatprep.subr.mxu0 0.0
    %1012 = vmatpush1.msra.mxu0 0.0
    %1013 = vmatprep.subr.mxu0 0.0
    %1014 = vmatpush1.msra.mxu0 0.0
    %1015 = vmatprep.subr.mxu0 0.0
    %1016 = vmatpush1.msra.mxu0 0.0
    %1017 = vmatprep.subr.mxu0 0.0
    %1018 = vmatpush1.msra.mxu0 0.0
    %1019 = vmatprep.subr.mxu0 0.0
    %1020 = vmatpush1.msra.mxu0 0.0
    %1021 = vmatprep.subr.mxu0 0.0
    %1022 = vmatpush1.msra.mxu0 0.0
    %1023 = vmatprep.subr.mxu0 0.0
    %1024 = vmatpush1.msra.mxu0 0.0
    %1025 = vmatprep.subr.mxu0 0.0
    %1026 = vmatpush1.msra.mxu0 0.0
    %1027 = vmatprep.subr.mxu0 0.0
    %1028 = vmatpush1.msra.mxu0 0.0
    %1029 = vmatprep.subr.mxu0 0.0
    %1030 = vmatpush1.msra.mxu0 0.0
    %1031 = vmatprep.subr.mxu0 0.0
    %1032 = vmatpush1.msra.mxu0 0.0
    %1033 = vmatprep.subr.mxu0 0.0
    %1034 = vmatpush1.msra.mxu0 0.0
    %1035 = vmatprep.subr.mxu0 0.0
    %1036 = vmatpush1.msra.mxu0 0.0
    %1037 = vmatprep.subr.mxu0 0.0
    %1038 = vmatpush1.msra.mxu0 0.0
    %1039 = vmatprep.subr.mxu0 0.0
    %1040 = vmatpush1.msra.mxu0 0.0
    %1041 = vmatprep.subr.mxu0 0.0
    %1042 = vmatpush1.msra.mxu0 0.0
    %1043 = vmatprep.subr.mxu0 0.0
    %1044 = vmatpush1.msra.mxu0 0.0
    %1045 = vmatprep.subr.mxu0 0.0
    %1046 = vmatpush1.msra.mxu0 0.0
    %1047 = vmatprep.subr.mxu0 0.0
    %1048 = vmatpush1.msra.mxu0 0.0
    %1049 = vmatprep.subr.mxu0 0.0
    %1050 = vmatpush1.msra.mxu0 0.0
    %1051 = vmatprep.subr.mxu0 0.0
    %1052 = vmatpush1.msra.mxu0 0.0
    %1053 = vmatprep.subr.mxu0 0.0
    %1054 = vmatpush1.msra.mxu0 0.0
    %1055 = vmatprep.subr.mxu0 0.0
    %1056 = vmatpush1.msra.mxu0 0.0
    %1057 = vmatprep.subr.mxu0 0.0
    %1058 = vmatpush1.msra.mxu0 0.0
    %1059 = vmatprep.subr.mxu0 0.0
    %1060 = vmatpush1.msra.mxu0 0.0
    %1061 = vmatprep.mubr.f32.mxu0 0.0
    %v1062 = vand.u32 %v581, 4294901760
    %1063 = vmatmul.mubr.f32.gmra.mrb[0].mxu0 %v1062
    %v1064 = vpop.f32.mrb[0].mxu0
    %v1065 = vadd.f32 %v990, %v1064
    %v1066 = vpop.f32.mrb[0].mxu0
    %1067 = vdwg.mxu0
    %v1069 = vsel %vm91, %v45, 0
    %1071 = vmatprep.subr.mxu0 0.0
    %v1072 = vand.u32 %v55, 4294901760
    %1073 = vmatpush1.msra.mxu0 %v1072
    %1074 = vmatprep.subr.mxu0 0.0
    %v1075 = vand.u32 %v56, 4294901760
    %1076 = vmatpush1.msra.mxu0 %v1075
    %1077 = vmatprep.subr.mxu0 0.0
    %v1078 = vand.u32 %v57, 4294901760
    %1079 = vmatpush1.msra.mxu0 %v1078
    %1080 = vmatprep.subr.mxu0 0.0
    %v1081 = vand.u32 %v58, 4294901760
    %1082 = vmatpush1.msra.mxu0 %v1081
    %1083 = vmatprep.subr.mxu0 0.0
    %1084 = vmatpush1.msra.mxu0 0.0
    %1085 = vmatprep.subr.mxu0 0.0
    %1086 = vmatpush1.msra.mxu0 0.0
    %1087 = vmatprep.subr.mxu0 0.0
    %1088 = vmatpush1.msra.mxu0 0.0
    %1089 = vmatprep.subr.mxu0 0.0
    %1090 = vmatpush1.msra.mxu0 0.0
    %1091 = vmatprep.subr.mxu0 0.0
    %1092 = vmatpush1.msra.mxu0 0.0
    %1093 = vmatprep.subr.mxu0 0.0
    %1094 = vmatpush1.msra.mxu0 0.0
    %1095 = vmatprep.subr.mxu0 0.0
    %1096 = vmatpush1.msra.mxu0 0.0
    %1097 = vmatprep.subr.mxu0 0.0
    %1098 = vmatpush1.msra.mxu0 0.0
    %1099 = vmatprep.subr.mxu0 0.0
    %1100 = vmatpush1.msra.mxu0 0.0
    %1101 = vmatprep.subr.mxu0 0.0
    %1102 = vmatpush1.msra.mxu0 0.0
    %1103 = vmatprep.subr.mxu0 0.0
    %1104 = vmatpush1.msra.mxu0 0.0
    %1105 = vmatprep.subr.mxu0 0.0
    %1106 = vmatpush1.msra.mxu0 0.0
    %1107 = vmatprep.subr.mxu0 0.0
    %1108 = vmatpush1.msra.mxu0 0.0
    %1109 = vmatprep.subr.mxu0 0.0
    %1110 = vmatpush1.msra.mxu0 0.0
    %1111 = vmatprep.subr.mxu0 0.0
    %1112 = vmatpush1.msra.mxu0 0.0
    %1113 = vmatprep.subr.mxu0 0.0
    %1114 = vmatpush1.msra.mxu0 0.0
    %1115 = vmatprep.subr.mxu0 0.0
    %1116 = vmatpush1.msra.mxu0 0.0
    %1117 = vmatprep.subr.mxu0 0.0
    %1118 = vmatpush1.msra.mxu0 0.0
    %1119 = vmatprep.subr.mxu0 0.0
    %1120 = vmatpush1.msra.mxu0 0.0
    %1121 = vmatprep.subr.mxu0 0.0
    %1122 = vmatpush1.msra.mxu0 0.0
    %1123 = vmatprep.subr.mxu0 0.0
    %1124 = vmatpush1.msra.mxu0 0.0
    %1125 = vmatprep.subr.mxu0 0.0
    %1126 = vmatpush1.msra.mxu0 0.0
    %1127 = vmatprep.subr.mxu0 0.0
    %1128 = vmatpush1.msra.mxu0 0.0
    %1129 = vmatprep.subr.mxu0 0.0
    %1130 = vmatpush1.msra.mxu0 0.0
    %1131 = vmatprep.subr.mxu0 0.0
    %1132 = vmatpush1.msra.mxu0 0.0
    %1133 = vmatprep.subr.mxu0 0.0
    %1134 = vmatpush1.msra.mxu0 0.0
    %1135 = vmatprep.subr.mxu0 0.0
    %1136 = vmatpush1.msra.mxu0 0.0
    %1137 = vmatprep.subr.mxu0 0.0
    %1138 = vmatpush1.msra.mxu0 0.0
    %1139 = vmatprep.mubr.f32.mxu0 0.0
    %v1140 = vand.u32 %v1069, 4294901760
    %v1141 = vsub.f32 %v1069, %v1140
    %v1142 = vand.u32 %v1141, 4294901760
    %v1143 = vsub.f32 %v1141, %v1142
    %v1144 = vand.u32 %v1143, 4294901760
    %1145 = vmatmul.mubr.f32.gmra.mrb[0].mxu0 %v1144
    %v1146 = vpop.f32.mrb[0].mxu0
    %v1147 = vadd.f32 %v82, %v1146
    %v1148 = vpop.f32.mrb[0].mxu0
    %1149 = vdwg.mxu0
    %1150 = vmatprep.subr.mxu0 0.0
    %v1151 = vand.u32 %v55, 4294901760
    %v1152 = vsub.f32 %v55, %v1151
    %v1153 = vand.u32 %v1152, 4294901760
    %v1154 = vsub.f32 %v1152, %v1153
    %v1155 = vand.u32 %v1154, 4294901760
    %1156 = vmatpush1.msra.mxu0 %v1155
    %1157 = vmatprep.subr.mxu0 0.0
    %v1158 = vand.u32 %v56, 4294901760
    %v1159 = vsub.f32 %v56, %v1158
    %v1160 = vand.u32 %v1159, 4294901760
    %v1161 = vsub.f32 %v1159, %v1160
    %v1162 = vand.u32 %v1161, 4294901760
    %1163 = vmatpush1.msra.mxu0 %v1162
    %1164 = vmatprep.subr.mxu0 0.0
    %v1165 = vand.u32 %v57, 4294901760
    %v1166 = vsub.f32 %v57, %v1165
    %v1167 = vand.u32 %v1166, 4294901760
    %v1168 = vsub.f32 %v1166, %v1167
    %v1169 = vand.u32 %v1168, 4294901760
    %1170 = vmatpush1.msra.mxu0 %v1169
    %1171 = vmatprep.subr.mxu0 0.0
    %v1172 = vand.u32 %v58, 4294901760
    %v1173 = vsub.f32 %v58, %v1172
    %v1174 = vand.u32 %v1173, 4294901760
    %v1175 = vsub.f32 %v1173, %v1174
    %v1176 = vand.u32 %v1175, 4294901760
    %1177 = vmatpush1.msra.mxu0 %v1176
    %1178 = vmatprep.subr.mxu0 0.0
    %1179 = vmatpush1.msra.mxu0 0.0
    %1180 = vmatprep.subr.mxu0 0.0
    %1181 = vmatpush1.msra.mxu0 0.0
    %1182 = vmatprep.subr.mxu0 0.0
    %1183 = vmatpush1.msra.mxu0 0.0
    %1184 = vmatprep.subr.mxu0 0.0
    %1185 = vmatpush1.msra.mxu0 0.0
    %1186 = vmatprep.subr.mxu0 0.0
    %1187 = vmatpush1.msra.mxu0 0.0
    %1188 = vmatprep.subr.mxu0 0.0
    %1189 = vmatpush1.msra.mxu0 0.0
    %1190 = vmatprep.subr.mxu0 0.0
    %1191 = vmatpush1.msra.mxu0 0.0
    %1192 = vmatprep.subr.mxu0 0.0
    %1193 = vmatpush1.msra.mxu0 0.0
    %1194 = vmatprep.subr.mxu0 0.0
    %1195 = vmatpush1.msra.mxu0 0.0
    %1196 = vmatprep.subr.mxu0 0.0
    %1197 = vmatpush1.msra.mxu0 0.0
    %1198 = vmatprep.subr.mxu0 0.0
    %1199 = vmatpush1.msra.mxu0 0.0
    %1200 = vmatprep.subr.mxu0 0.0
    %1201 = vmatpush1.msra.mxu0 0.0
    %1202 = vmatprep.subr.mxu0 0.0
    %1203 = vmatpush1.msra.mxu0 0.0
    %1204 = vmatprep.subr.mxu0 0.0
    %1205 = vmatpush1.msra.mxu0 0.0
    %1206 = vmatprep.subr.mxu0 0.0
    %1207 = vmatpush1.msra.mxu0 0.0
    %1208 = vmatprep.subr.mxu0 0.0
    %1209 = vmatpush1.msra.mxu0 0.0
    %1210 = vmatprep.subr.mxu0 0.0
    %1211 = vmatpush1.msra.mxu0 0.0
    %1212 = vmatprep.subr.mxu0 0.0
    %1213 = vmatpush1.msra.mxu0 0.0
    %1214 = vmatprep.subr.mxu0 0.0
    %1215 = vmatpush1.msra.mxu0 0.0
    %1216 = vmatprep.subr.mxu0 0.0
    %1217 = vmatpush1.msra.mxu0 0.0
    %1218 = vmatprep.subr.mxu0 0.0
    %1219 = vmatpush1.msra.mxu0 0.0
    %1220 = vmatprep.subr.mxu0 0.0
    %1221 = vmatpush1.msra.mxu0 0.0
    %1222 = vmatprep.subr.mxu0 0.0
    %1223 = vmatpush1.msra.mxu0 0.0
    %1224 = vmatprep.subr.mxu0 0.0
    %1225 = vmatpush1.msra.mxu0 0.0
    %1226 = vmatprep.subr.mxu0 0.0
    %1227 = vmatpush1.msra.mxu0 0.0
    %1228 = vmatprep.subr.mxu0 0.0
    %1229 = vmatpush1.msra.mxu0 0.0
    %1230 = vmatprep.subr.mxu0 0.0
    %1231 = vmatpush1.msra.mxu0 0.0
    %1232 = vmatprep.subr.mxu0 0.0
    %1233 = vmatpush1.msra.mxu0 0.0
    %1234 = vmatprep.mubr.f32.mxu0 0.0
    %v1235 = vand.u32 %v1069, 4294901760
    %1236 = vmatmul.mubr.f32.gmra.mrb[0].mxu0 %v1235
    %v1237 = vpop.f32.mrb[0].mxu0
    %v1238 = vadd.f32 %v1147, %v1237
    %v1239 = vpop.f32.mrb[0].mxu0
    %1240 = vdwg.mxu0
    %1241 = vmatprep.subr.mxu0 0.0
    %v1242 = vand.u32 %v55, 4294901760
    %v1243 = vsub.f32 %v55, %v1242
    %1244 = vmatpush1.msra.mxu0 %v1243
    %1245 = vmatprep.subr.mxu0 0.0
    %v1246 = vand.u32 %v56, 4294901760
    %v1247 = vsub.f32 %v56, %v1246
    %1248 = vmatpush1.msra.mxu0 %v1247
    %1249 = vmatprep.subr.mxu0 0.0
    %v1250 = vand.u32 %v57, 4294901760
    %v1251 = vsub.f32 %v57, %v1250
    %1252 = vmatpush1.msra.mxu0 %v1251
    %1253 = vmatprep.subr.mxu0 0.0
    %v1254 = vand.u32 %v58, 4294901760
    %v1255 = vsub.f32 %v58, %v1254
    %1256 = vmatpush1.msra.mxu0 %v1255
    %1257 = vmatprep.subr.mxu0 0.0
    %1258 = vmatpush1.msra.mxu0 0.0
    %1259 = vmatprep.subr.mxu0 0.0
    %1260 = vmatpush1.msra.mxu0 0.0
    %1261 = vmatprep.subr.mxu0 0.0
    %1262 = vmatpush1.msra.mxu0 0.0
    %1263 = vmatprep.subr.mxu0 0.0
    %1264 = vmatpush1.msra.mxu0 0.0
    %1265 = vmatprep.subr.mxu0 0.0
    %1266 = vmatpush1.msra.mxu0 0.0
    %1267 = vmatprep.subr.mxu0 0.0
    %1268 = vmatpush1.msra.mxu0 0.0
    %1269 = vmatprep.subr.mxu0 0.0
    %1270 = vmatpush1.msra.mxu0 0.0
    %1271 = vmatprep.subr.mxu0 0.0
    %1272 = vmatpush1.msra.mxu0 0.0
    %1273 = vmatprep.subr.mxu0 0.0
    %1274 = vmatpush1.msra.mxu0 0.0
    %1275 = vmatprep.subr.mxu0 0.0
    %1276 = vmatpush1.msra.mxu0 0.0
    %1277 = vmatprep.subr.mxu0 0.0
    %1278 = vmatpush1.msra.mxu0 0.0
    %1279 = vmatprep.subr.mxu0 0.0
    %1280 = vmatpush1.msra.mxu0 0.0
    %1281 = vmatprep.subr.mxu0 0.0
    %1282 = vmatpush1.msra.mxu0 0.0
    %1283 = vmatprep.subr.mxu0 0.0
    %1284 = vmatpush1.msra.mxu0 0.0
    %1285 = vmatprep.subr.mxu0 0.0
    %1286 = vmatpush1.msra.mxu0 0.0
    %1287 = vmatprep.subr.mxu0 0.0
    %1288 = vmatpush1.msra.mxu0 0.0
    %1289 = vmatprep.subr.mxu0 0.0
    %1290 = vmatpush1.msra.mxu0 0.0
    %1291 = vmatprep.subr.mxu0 0.0
    %1292 = vmatpush1.msra.mxu0 0.0
    %1293 = vmatprep.subr.mxu0 0.0
    %1294 = vmatpush1.msra.mxu0 0.0
    %1295 = vmatprep.subr.mxu0 0.0
    %1296 = vmatpush1.msra.mxu0 0.0
    %1297 = vmatprep.subr.mxu0 0.0
    %1298 = vmatpush1.msra.mxu0 0.0
    %1299 = vmatprep.subr.mxu0 0.0
    %1300 = vmatpush1.msra.mxu0 0.0
    %1301 = vmatprep.subr.mxu0 0.0
    %1302 = vmatpush1.msra.mxu0 0.0
    %1303 = vmatprep.subr.mxu0 0.0
    %1304 = vmatpush1.msra.mxu0 0.0
    %1305 = vmatprep.subr.mxu0 0.0
    %1306 = vmatpush1.msra.mxu0 0.0
    %1307 = vmatprep.subr.mxu0 0.0
    %1308 = vmatpush1.msra.mxu0 0.0
    %1309 = vmatprep.subr.mxu0 0.0
    %1310 = vmatpush1.msra.mxu0 0.0
    %1311 = vmatprep.subr.mxu0 0.0
    %1312 = vmatpush1.msra.mxu0 0.0
    %1313 = vmatprep.mubr.f32.mxu0 0.0
    %v1314 = vand.u32 %v1069, 4294901760
    %v1315 = vsub.f32 %v1069, %v1314
    %1316 = vmatmul.mubr.f32.gmra.mrb[0].mxu0 %v1315
    %v1317 = vpop.f32.mrb[0].mxu0
    %v1318 = vadd.f32 %v1238, %v1317
    %v1319 = vpop.f32.mrb[0].mxu0
    %1320 = vdwg.mxu0
    %1321 = vmatprep.subr.mxu0 0.0
    %v1322 = vand.u32 %v55, 4294901760
    %1323 = vmatpush1.msra.mxu0 %v1322
    %1324 = vmatprep.subr.mxu0 0.0
    %v1325 = vand.u32 %v56, 4294901760
    %1326 = vmatpush1.msra.mxu0 %v1325
    %1327 = vmatprep.subr.mxu0 0.0
    %v1328 = vand.u32 %v57, 4294901760
    %1329 = vmatpush1.msra.mxu0 %v1328
    %1330 = vmatprep.subr.mxu0 0.0
    %v1331 = vand.u32 %v58, 4294901760
    %1332 = vmatpush1.msra.mxu0 %v1331
    %1333 = vmatprep.subr.mxu0 0.0
    %1334 = vmatpush1.msra.mxu0 0.0
    %1335 = vmatprep.subr.mxu0 0.0
    %1336 = vmatpush1.msra.mxu0 0.0
    %1337 = vmatprep.subr.mxu0 0.0
    %1338 = vmatpush1.msra.mxu0 0.0
    %1339 = vmatprep.subr.mxu0 0.0
    %1340 = vmatpush1.msra.mxu0 0.0
    %1341 = vmatprep.subr.mxu0 0.0
    %1342 = vmatpush1.msra.mxu0 0.0
    %1343 = vmatprep.subr.mxu0 0.0
    %1344 = vmatpush1.msra.mxu0 0.0
    %1345 = vmatprep.subr.mxu0 0.0
    %1346 = vmatpush1.msra.mxu0 0.0
    %1347 = vmatprep.subr.mxu0 0.0
    %1348 = vmatpush1.msra.mxu0 0.0
    %1349 = vmatprep.subr.mxu0 0.0
    %1350 = vmatpush1.msra.mxu0 0.0
    %1351 = vmatprep.subr.mxu0 0.0
    %1352 = vmatpush1.msra.mxu0 0.0
    %1353 = vmatprep.subr.mxu0 0.0
    %1354 = vmatpush1.msra.mxu0 0.0
    %1355 = vmatprep.subr.mxu0 0.0
    %1356 = vmatpush1.msra.mxu0 0.0
    %1357 = vmatprep.subr.mxu0 0.0
    %1358 = vmatpush1.msra.mxu0 0.0
    %1359 = vmatprep.subr.mxu0 0.0
    %1360 = vmatpush1.msra.mxu0 0.0
    %1361 = vmatprep.subr.mxu0 0.0
    %1362 = vmatpush1.msra.mxu0 0.0
    %1363 = vmatprep.subr.mxu0 0.0
    %1364 = vmatpush1.msra.mxu0 0.0
    %1365 = vmatprep.subr.mxu0 0.0
    %1366 = vmatpush1.msra.mxu0 0.0
    %1367 = vmatprep.subr.mxu0 0.0
    %1368 = vmatpush1.msra.mxu0 0.0
    %1369 = vmatprep.subr.mxu0 0.0
    %1370 = vmatpush1.msra.mxu0 0.0
    %1371 = vmatprep.subr.mxu0 0.0
    %1372 = vmatpush1.msra.mxu0 0.0
    %1373 = vmatprep.subr.mxu0 0.0
    %1374 = vmatpush1.msra.mxu0 0.0
    %1375 = vmatprep.subr.mxu0 0.0
    %1376 = vmatpush1.msra.mxu0 0.0
    %1377 = vmatprep.subr.mxu0 0.0
    %1378 = vmatpush1.msra.mxu0 0.0
    %1379 = vmatprep.subr.mxu0 0.0
    %1380 = vmatpush1.msra.mxu0 0.0
    %1381 = vmatprep.subr.mxu0 0.0
    %1382 = vmatpush1.msra.mxu0 0.0
    %1383 = vmatprep.subr.mxu0 0.0
    %1384 = vmatpush1.msra.mxu0 0.0
    %1385 = vmatprep.subr.mxu0 0.0
    %1386 = vmatpush1.msra.mxu0 0.0
    %1387 = vmatprep.subr.mxu0 0.0
    %1388 = vmatpush1.msra.mxu0 0.0
    %1389 = vmatprep.mubr.f32.mxu0 0.0
    %v1390 = vand.u32 %v1069, 4294901760
    %v1391 = vsub.f32 %v1069, %v1390
    %v1392 = vand.u32 %v1391, 4294901760
    %1393 = vmatmul.mubr.f32.gmra.mrb[0].mxu0 %v1392
    %v1394 = vpop.f32.mrb[0].mxu0
    %v1395 = vadd.f32 %v1318, %v1394
    %v1396 = vpop.f32.mrb[0].mxu0
    %1397 = vdwg.mxu0
    %1398 = vmatprep.subr.mxu0 0.0
    %v1399 = vand.u32 %v55, 4294901760
    %v1400 = vsub.f32 %v55, %v1399
    %v1401 = vand.u32 %v1400, 4294901760
    %1402 = vmatpush1.msra.mxu0 %v1401
    %1403 = vmatprep.subr.mxu0 0.0
    %v1404 = vand.u32 %v56, 4294901760
    %v1405 = vsub.f32 %v56, %v1404
    %v1406 = vand.u32 %v1405, 4294901760
    %1407 = vmatpush1.msra.mxu0 %v1406
    %1408 = vmatprep.subr.mxu0 0.0
    %v1409 = vand.u32 %v57, 4294901760
    %v1410 = vsub.f32 %v57, %v1409
    %v1411 = vand.u32 %v1410, 4294901760
    %1412 = vmatpush1.msra.mxu0 %v1411
    %1413 = vmatprep.subr.mxu0 0.0
    %v1414 = vand.u32 %v58, 4294901760
    %v1415 = vsub.f32 %v58, %v1414
    %v1416 = vand.u32 %v1415, 4294901760
    %1417 = vmatpush1.msra.mxu0 %v1416
    %1418 = vmatprep.subr.mxu0 0.0
    %1419 = vmatpush1.msra.mxu0 0.0
    %1420 = vmatprep.subr.mxu0 0.0
    %1421 = vmatpush1.msra.mxu0 0.0
    %1422 = vmatprep.subr.mxu0 0.0
    %1423 = vmatpush1.msra.mxu0 0.0
    %1424 = vmatprep.subr.mxu0 0.0
    %1425 = vmatpush1.msra.mxu0 0.0
    %1426 = vmatprep.subr.mxu0 0.0
    %1427 = vmatpush1.msra.mxu0 0.0
    %1428 = vmatprep.subr.mxu0 0.0
    %1429 = vmatpush1.msra.mxu0 0.0
    %1430 = vmatprep.subr.mxu0 0.0
    %1431 = vmatpush1.msra.mxu0 0.0
    %1432 = vmatprep.subr.mxu0 0.0
    %1433 = vmatpush1.msra.mxu0 0.0
    %1434 = vmatprep.subr.mxu0 0.0
    %1435 = vmatpush1.msra.mxu0 0.0
    %1436 = vmatprep.subr.mxu0 0.0
    %1437 = vmatpush1.msra.mxu0 0.0
    %1438 = vmatprep.subr.mxu0 0.0
    %1439 = vmatpush1.msra.mxu0 0.0
    %1440 = vmatprep.subr.mxu0 0.0
    %1441 = vmatpush1.msra.mxu0 0.0
    %1442 = vmatprep.subr.mxu0 0.0
    %1443 = vmatpush1.msra.mxu0 0.0
    %1444 = vmatprep.subr.mxu0 0.0
    %1445 = vmatpush1.msra.mxu0 0.0
    %1446 = vmatprep.subr.mxu0 0.0
    %1447 = vmatpush1.msra.mxu0 0.0
    %1448 = vmatprep.subr.mxu0 0.0
    %1449 = vmatpush1.msra.mxu0 0.0
    %1450 = vmatprep.subr.mxu0 0.0
    %1451 = vmatpush1.msra.mxu0 0.0
    %1452 = vmatprep.subr.mxu0 0.0
    %1453 = vmatpush1.msra.mxu0 0.0
    %1454 = vmatprep.subr.mxu0 0.0
    %1455 = vmatpush1.msra.mxu0 0.0
    %1456 = vmatprep.subr.mxu0 0.0
    %1457 = vmatpush1.msra.mxu0 0.0
    %1458 = vmatprep.subr.mxu0 0.0
    %1459 = vmatpush1.msra.mxu0 0.0
    %1460 = vmatprep.subr.mxu0 0.0
    %1461 = vmatpush1.msra.mxu0 0.0
    %1462 = vmatprep.subr.mxu0 0.0
    %1463 = vmatpush1.msra.mxu0 0.0
    %1464 = vmatprep.subr.mxu0 0.0
    %1465 = vmatpush1.msra.mxu0 0.0
    %1466 = vmatprep.subr.mxu0 0.0
    %1467 = vmatpush1.msra.mxu0 0.0
    %1468 = vmatprep.subr.mxu0 0.0
    %1469 = vmatpush1.msra.mxu0 0.0
    %1470 = vmatprep.subr.mxu0 0.0
    %1471 = vmatpush1.msra.mxu0 0.0
    %1472 = vmatprep.subr.mxu0 0.0
    %1473 = vmatpush1.msra.mxu0 0.0
    %1474 = vmatprep.mubr.f32.mxu0 0.0
    %v1475 = vand.u32 %v1069, 4294901760
    %1476 = vmatmul.mubr.f32.gmra.mrb[0].mxu0 %v1475
    %v1477 = vpop.f32.mrb[0].mxu0
    %v1478 = vadd.f32 %v1395, %v1477
    %v1479 = vpop.f32.mrb[0].mxu0
    %1480 = vdwg.mxu0
    %1481 = vmatprep.subr.mxu0 0.0
    %v1482 = vand.u32 %v55, 4294901760
    %1483 = vmatpush1.msra.mxu0 %v1482
    %1484 = vmatprep.subr.mxu0 0.0
    %v1485 = vand.u32 %v56, 4294901760
    %1486 = vmatpush1.msra.mxu0 %v1485
    %1487 = vmatprep.subr.mxu0 0.0
    %v1488 = vand.u32 %v57, 4294901760
    %1489 = vmatpush1.msra.mxu0 %v1488
    %1490 = vmatprep.subr.mxu0 0.0
    %v1491 = vand.u32 %v58, 4294901760
    %1492 = vmatpush1.msra.mxu0 %v1491
    %1493 = vmatprep.subr.mxu0 0.0
    %1494 = vmatpush1.msra.mxu0 0.0
    %1495 = vmatprep.subr.mxu0 0.0
    %1496 = vmatpush1.msra.mxu0 0.0
    %1497 = vmatprep.subr.mxu0 0.0
    %1498 = vmatpush1.msra.mxu0 0.0
    %1499 = vmatprep.subr.mxu0 0.0
    %1500 = vmatpush1.msra.mxu0 0.0
    %1501 = vmatprep.subr.mxu0 0.0
    %1502 = vmatpush1.msra.mxu0 0.0
    %1503 = vmatprep.subr.mxu0 0.0
    %1504 = vmatpush1.msra.mxu0 0.0
    %1505 = vmatprep.subr.mxu0 0.0
    %1506 = vmatpush1.msra.mxu0 0.0
    %1507 = vmatprep.subr.mxu0 0.0
    %1508 = vmatpush1.msra.mxu0 0.0
    %1509 = vmatprep.subr.mxu0 0.0
    %1510 = vmatpush1.msra.mxu0 0.0
    %1511 = vmatprep.subr.mxu0 0.0
    %1512 = vmatpush1.msra.mxu0 0.0
    %1513 = vmatprep.subr.mxu0 0.0
    %1514 = vmatpush1.msra.mxu0 0.0
    %1515 = vmatprep.subr.mxu0 0.0
    %1516 = vmatpush1.msra.mxu0 0.0
    %1517 = vmatprep.subr.mxu0 0.0
    %1518 = vmatpush1.msra.mxu0 0.0
    %1519 = vmatprep.subr.mxu0 0.0
    %1520 = vmatpush1.msra.mxu0 0.0
    %1521 = vmatprep.subr.mxu0 0.0
    %1522 = vmatpush1.msra.mxu0 0.0
    %1523 = vmatprep.subr.mxu0 0.0
    %1524 = vmatpush1.msra.mxu0 0.0
    %1525 = vmatprep.subr.mxu0 0.0
    %1526 = vmatpush1.msra.mxu0 0.0
    %1527 = vmatprep.subr.mxu0 0.0
    %1528 = vmatpush1.msra.mxu0 0.0
    %1529 = vmatprep.subr.mxu0 0.0
    %1530 = vmatpush1.msra.mxu0 0.0
    %1531 = vmatprep.subr.mxu0 0.0
    %1532 = vmatpush1.msra.mxu0 0.0
    %1533 = vmatprep.subr.mxu0 0.0
    %1534 = vmatpush1.msra.mxu0 0.0
    %1535 = vmatprep.subr.mxu0 0.0
    %1536 = vmatpush1.msra.mxu0 0.0
    %1537 = vmatprep.subr.mxu0 0.0
    %1538 = vmatpush1.msra.mxu0 0.0
    %1539 = vmatprep.subr.mxu0 0.0
    %1540 = vmatpush1.msra.mxu0 0.0
    %1541 = vmatprep.subr.mxu0 0.0
    %1542 = vmatpush1.msra.mxu0 0.0
    %1543 = vmatprep.subr.mxu0 0.0
    %1544 = vmatpush1.msra.mxu0 0.0
    %1545 = vmatprep.subr.mxu0 0.0
    %1546 = vmatpush1.msra.mxu0 0.0
    %1547 = vmatprep.subr.mxu0 0.0
    %1548 = vmatpush1.msra.mxu0 0.0
    %1549 = vmatprep.mubr.f32.mxu0 0.0
    %v1550 = vand.u32 %v1069, 4294901760
    %1551 = vmatmul.mubr.f32.gmra.mrb[0].mxu0 %v1550
    %v1552 = vpop.f32.mrb[0].mxu0
    %v1553 = vadd.f32 %v1478, %v1552
    %v1554 = vpop.f32.mrb[0].mxu0
    %1555 = vdwg.mxu0
    %v1557 = vsel %vm91, %v46, 0
    %1559 = vmatprep.subr.mxu0 0.0
    %v1560 = vand.u32 %v59, 4294901760
    %1561 = vmatpush1.msra.mxu0 %v1560
    %1562 = vmatprep.subr.mxu0 0.0
    %v1563 = vand.u32 %v60, 4294901760
    %1564 = vmatpush1.msra.mxu0 %v1563
    %1565 = vmatprep.subr.mxu0 0.0
    %v1566 = vand.u32 %v61, 4294901760
    %1567 = vmatpush1.msra.mxu0 %v1566
    %1568 = vmatprep.subr.mxu0 0.0
    %v1569 = vand.u32 %v62, 4294901760
    %1570 = vmatpush1.msra.mxu0 %v1569
    %1571 = vmatprep.subr.mxu0 0.0
    %1572 = vmatpush1.msra.mxu0 0.0
    %1573 = vmatprep.subr.mxu0 0.0
    %1574 = vmatpush1.msra.mxu0 0.0
    %1575 = vmatprep.subr.mxu0 0.0
    %1576 = vmatpush1.msra.mxu0 0.0
    %1577 = vmatprep.subr.mxu0 0.0
    %1578 = vmatpush1.msra.mxu0 0.0
    %1579 = vmatprep.subr.mxu0 0.0
    %1580 = vmatpush1.msra.mxu0 0.0
    %1581 = vmatprep.subr.mxu0 0.0
    %1582 = vmatpush1.msra.mxu0 0.0
    %1583 = vmatprep.subr.mxu0 0.0
    %1584 = vmatpush1.msra.mxu0 0.0
    %1585 = vmatprep.subr.mxu0 0.0
    %1586 = vmatpush1.msra.mxu0 0.0
    %1587 = vmatprep.subr.mxu0 0.0
    %1588 = vmatpush1.msra.mxu0 0.0
    %1589 = vmatprep.subr.mxu0 0.0
    %1590 = vmatpush1.msra.mxu0 0.0
    %1591 = vmatprep.subr.mxu0 0.0
    %1592 = vmatpush1.msra.mxu0 0.0
    %1593 = vmatprep.subr.mxu0 0.0
    %1594 = vmatpush1.msra.mxu0 0.0
    %1595 = vmatprep.subr.mxu0 0.0
    %1596 = vmatpush1.msra.mxu0 0.0
    %1597 = vmatprep.subr.mxu0 0.0
    %1598 = vmatpush1.msra.mxu0 0.0
    %1599 = vmatprep.subr.mxu0 0.0
    %1600 = vmatpush1.msra.mxu0 0.0
    %1601 = vmatprep.subr.mxu0 0.0
    %1602 = vmatpush1.msra.mxu0 0.0
    %1603 = vmatprep.subr.mxu0 0.0
    %1604 = vmatpush1.msra.mxu0 0.0
    %1605 = vmatprep.subr.mxu0 0.0
    %1606 = vmatpush1.msra.mxu0 0.0
    %1607 = vmatprep.subr.mxu0 0.0
    %1608 = vmatpush1.msra.mxu0 0.0
    %1609 = vmatprep.subr.mxu0 0.0
    %1610 = vmatpush1.msra.mxu0 0.0
    %1611 = vmatprep.subr.mxu0 0.0
    %1612 = vmatpush1.msra.mxu0 0.0
    %1613 = vmatprep.subr.mxu0 0.0
    %1614 = vmatpush1.msra.mxu0 0.0
    %1615 = vmatprep.subr.mxu0 0.0
    %1616 = vmatpush1.msra.mxu0 0.0
    %1617 = vmatprep.subr.mxu0 0.0
    %1618 = vmatpush1.msra.mxu0 0.0
    %1619 = vmatprep.subr.mxu0 0.0
    %1620 = vmatpush1.msra.mxu0 0.0
    %1621 = vmatprep.subr.mxu0 0.0
    %1622 = vmatpush1.msra.mxu0 0.0
    %1623 = vmatprep.subr.mxu0 0.0
    %1624 = vmatpush1.msra.mxu0 0.0
    %1625 = vmatprep.subr.mxu0 0.0
    %1626 = vmatpush1.msra.mxu0 0.0
    %1627 = vmatprep.mubr.f32.mxu0 0.0
    %v1628 = vand.u32 %v1557, 4294901760
    %v1629 = vsub.f32 %v1557, %v1628
    %v1630 = vand.u32 %v1629, 4294901760
    %v1631 = vsub.f32 %v1629, %v1630
    %v1632 = vand.u32 %v1631, 4294901760
    %1633 = vmatmul.mubr.f32.gmra.mrb[0].mxu0 %v1632
    %v1634 = vpop.f32.mrb[0].mxu0
    %v1635 = vadd.f32 %v86, %v1634
    %v1636 = vpop.f32.mrb[0].mxu0
    %1637 = vdwg.mxu0
    %1638 = vmatprep.subr.mxu0 0.0
    %v1639 = vand.u32 %v59, 4294901760
    %v1640 = vsub.f32 %v59, %v1639
    %v1641 = vand.u32 %v1640, 4294901760
    %v1642 = vsub.f32 %v1640, %v1641
    %v1643 = vand.u32 %v1642, 4294901760
    %1644 = vmatpush1.msra.mxu0 %v1643
    %1645 = vmatprep.subr.mxu0 0.0
    %v1646 = vand.u32 %v60, 4294901760
    %v1647 = vsub.f32 %v60, %v1646
    %v1648 = vand.u32 %v1647, 4294901760
    %v1649 = vsub.f32 %v1647, %v1648
    %v1650 = vand.u32 %v1649, 4294901760
    %1651 = vmatpush1.msra.mxu0 %v1650
    %1652 = vmatprep.subr.mxu0 0.0
    %v1653 = vand.u32 %v61, 4294901760
    %v1654 = vsub.f32 %v61, %v1653
    %v1655 = vand.u32 %v1654, 4294901760
    %v1656 = vsub.f32 %v1654, %v1655
    %v1657 = vand.u32 %v1656, 4294901760
    %1658 = vmatpush1.msra.mxu0 %v1657
    %1659 = vmatprep.subr.mxu0 0.0
    %v1660 = vand.u32 %v62, 4294901760
    %v1661 = vsub.f32 %v62, %v1660
    %v1662 = vand.u32 %v1661, 4294901760
    %v1663 = vsub.f32 %v1661, %v1662
    %v1664 = vand.u32 %v1663, 4294901760
    %1665 = vmatpush1.msra.mxu0 %v1664
    %1666 = vmatprep.subr.mxu0 0.0
    %1667 = vmatpush1.msra.mxu0 0.0
    %1668 = vmatprep.subr.mxu0 0.0
    %1669 = vmatpush1.msra.mxu0 0.0
    %1670 = vmatprep.subr.mxu0 0.0
    %1671 = vmatpush1.msra.mxu0 0.0
    %1672 = vmatprep.subr.mxu0 0.0
    %1673 = vmatpush1.msra.mxu0 0.0
    %1674 = vmatprep.subr.mxu0 0.0
    %1675 = vmatpush1.msra.mxu0 0.0
    %1676 = vmatprep.subr.mxu0 0.0
    %1677 = vmatpush1.msra.mxu0 0.0
    %1678 = vmatprep.subr.mxu0 0.0
    %1679 = vmatpush1.msra.mxu0 0.0
    %1680 = vmatprep.subr.mxu0 0.0
    %1681 = vmatpush1.msra.mxu0 0.0
    %1682 = vmatprep.subr.mxu0 0.0
    %1683 = vmatpush1.msra.mxu0 0.0
    %1684 = vmatprep.subr.mxu0 0.0
    %1685 = vmatpush1.msra.mxu0 0.0
    %1686 = vmatprep.subr.mxu0 0.0
    %1687 = vmatpush1.msra.mxu0 0.0
    %1688 = vmatprep.subr.mxu0 0.0
    %1689 = vmatpush1.msra.mxu0 0.0
    %1690 = vmatprep.subr.mxu0 0.0
    %1691 = vmatpush1.msra.mxu0 0.0
    %1692 = vmatprep.subr.mxu0 0.0
    %1693 = vmatpush1.msra.mxu0 0.0
    %1694 = vmatprep.subr.mxu0 0.0
    %1695 = vmatpush1.msra.mxu0 0.0
    %1696 = vmatprep.subr.mxu0 0.0
    %1697 = vmatpush1.msra.mxu0 0.0
    %1698 = vmatprep.subr.mxu0 0.0
    %1699 = vmatpush1.msra.mxu0 0.0
    %1700 = vmatprep.subr.mxu0 0.0
    %1701 = vmatpush1.msra.mxu0 0.0
    %1702 = vmatprep.subr.mxu0 0.0
    %1703 = vmatpush1.msra.mxu0 0.0
    %1704 = vmatprep.subr.mxu0 0.0
    %1705 = vmatpush1.msra.mxu0 0.0
    %1706 = vmatprep.subr.mxu0 0.0
    %1707 = vmatpush1.msra.mxu0 0.0
    %1708 = vmatprep.subr.mxu0 0.0
    %1709 = vmatpush1.msra.mxu0 0.0
    %1710 = vmatprep.subr.mxu0 0.0
    %1711 = vmatpush1.msra.mxu0 0.0
    %1712 = vmatprep.subr.mxu0 0.0
    %1713 = vmatpush1.msra.mxu0 0.0
    %1714 = vmatprep.subr.mxu0 0.0
    %1715 = vmatpush1.msra.mxu0 0.0
    %1716 = vmatprep.subr.mxu0 0.0
    %1717 = vmatpush1.msra.mxu0 0.0
    %1718 = vmatprep.subr.mxu0 0.0
    %1719 = vmatpush1.msra.mxu0 0.0
    %1720 = vmatprep.subr.mxu0 0.0
    %1721 = vmatpush1.msra.mxu0 0.0
    %1722 = vmatprep.mubr.f32.mxu0 0.0
    %v1723 = vand.u32 %v1557, 4294901760
    %1724 = vmatmul.mubr.f32.gmra.mrb[0].mxu0 %v1723
    %v1725 = vpop.f32.mrb[0].mxu0
    %v1726 = vadd.f32 %v1635, %v1725
    %v1727 = vpop.f32.mrb[0].mxu0
    %1728 = vdwg.mxu0
    %1729 = vmatprep.subr.mxu0 0.0
    %v1730 = vand.u32 %v59, 4294901760
    %v1731 = vsub.f32 %v59, %v1730
    %1732 = vmatpush1.msra.mxu0 %v1731
    %1733 = vmatprep.subr.mxu0 0.0
    %v1734 = vand.u32 %v60, 4294901760
    %v1735 = vsub.f32 %v60, %v1734
    %1736 = vmatpush1.msra.mxu0 %v1735
    %1737 = vmatprep.subr.mxu0 0.0
    %v1738 = vand.u32 %v61, 4294901760
    %v1739 = vsub.f32 %v61, %v1738
    %1740 = vmatpush1.msra.mxu0 %v1739
    %1741 = vmatprep.subr.mxu0 0.0
    %v1742 = vand.u32 %v62, 4294901760
    %v1743 = vsub.f32 %v62, %v1742
    %1744 = vmatpush1.msra.mxu0 %v1743
    %1745 = vmatprep.subr.mxu0 0.0
    %1746 = vmatpush1.msra.mxu0 0.0
    %1747 = vmatprep.subr.mxu0 0.0
    %1748 = vmatpush1.msra.mxu0 0.0
    %1749 = vmatprep.subr.mxu0 0.0
    %1750 = vmatpush1.msra.mxu0 0.0
    %1751 = vmatprep.subr.mxu0 0.0
    %1752 = vmatpush1.msra.mxu0 0.0
    %1753 = vmatprep.subr.mxu0 0.0
    %1754 = vmatpush1.msra.mxu0 0.0
    %1755 = vmatprep.subr.mxu0 0.0
    %1756 = vmatpush1.msra.mxu0 0.0
    %1757 = vmatprep.subr.mxu0 0.0
    %1758 = vmatpush1.msra.mxu0 0.0
    %1759 = vmatprep.subr.mxu0 0.0
    %1760 = vmatpush1.msra.mxu0 0.0
    %1761 = vmatprep.subr.mxu0 0.0
    %1762 = vmatpush1.msra.mxu0 0.0
    %1763 = vmatprep.subr.mxu0 0.0
    %1764 = vmatpush1.msra.mxu0 0.0
    %1765 = vmatprep.subr.mxu0 0.0
    %1766 = vmatpush1.msra.mxu0 0.0
    %1767 = vmatprep.subr.mxu0 0.0
    %1768 = vmatpush1.msra.mxu0 0.0
    %1769 = vmatprep.subr.mxu0 0.0
    %1770 = vmatpush1.msra.mxu0 0.0
    %1771 = vmatprep.subr.mxu0 0.0
    %1772 = vmatpush1.msra.mxu0 0.0
    %1773 = vmatprep.subr.mxu0 0.0
    %1774 = vmatpush1.msra.mxu0 0.0
    %1775 = vmatprep.subr.mxu0 0.0
    %1776 = vmatpush1.msra.mxu0 0.0
    %1777 = vmatprep.subr.mxu0 0.0
    %1778 = vmatpush1.msra.mxu0 0.0
    %1779 = vmatprep.subr.mxu0 0.0
    %1780 = vmatpush1.msra.mxu0 0.0
    %1781 = vmatprep.subr.mxu0 0.0
    %1782 = vmatpush1.msra.mxu0 0.0
    %1783 = vmatprep.subr.mxu0 0.0
    %1784 = vmatpush1.msra.mxu0 0.0
    %1785 = vmatprep.subr.mxu0 0.0
    %1786 = vmatpush1.msra.mxu0 0.0
    %1787 = vmatprep.subr.mxu0 0.0
    %1788 = vmatpush1.msra.mxu0 0.0
    %1789 = vmatprep.subr.mxu0 0.0
    %1790 = vmatpush1.msra.mxu0 0.0
    %1791 = vmatprep.subr.mxu0 0.0
    %1792 = vmatpush1.msra.mxu0 0.0
    %1793 = vmatprep.subr.mxu0 0.0
    %1794 = vmatpush1.msra.mxu0 0.0
    %1795 = vmatprep.subr.mxu0 0.0
    %1796 = vmatpush1.msra.mxu0 0.0
    %1797 = vmatprep.subr.mxu0 0.0
    %1798 = vmatpush1.msra.mxu0 0.0
    %1799 = vmatprep.subr.mxu0 0.0
    %1800 = vmatpush1.msra.mxu0 0.0
    %1801 = vmatprep.mubr.f32.mxu0 0.0
    %v1802 = vand.u32 %v1557, 4294901760
    %v1803 = vsub.f32 %v1557, %v1802
    %1804 = vmatmul.mubr.f32.gmra.mrb[0].mxu0 %v1803
    %v1805 = vpop.f32.mrb[0].mxu0
    %v1806 = vadd.f32 %v1726, %v1805
    %v1807 = vpop.f32.mrb[0].mxu0
    %1808 = vdwg.mxu0
    %1809 = vmatprep.subr.mxu0 0.0
    %v1810 = vand.u32 %v59, 4294901760
    %1811 = vmatpush1.msra.mxu0 %v1810
    %1812 = vmatprep.subr.mxu0 0.0
    %v1813 = vand.u32 %v60, 4294901760
    %1814 = vmatpush1.msra.mxu0 %v1813
    %1815 = vmatprep.subr.mxu0 0.0
    %v1816 = vand.u32 %v61, 4294901760
    %1817 = vmatpush1.msra.mxu0 %v1816
    %1818 = vmatprep.subr.mxu0 0.0
    %v1819 = vand.u32 %v62, 4294901760
    %1820 = vmatpush1.msra.mxu0 %v1819
    %1821 = vmatprep.subr.mxu0 0.0
    %1822 = vmatpush1.msra.mxu0 0.0
    %1823 = vmatprep.subr.mxu0 0.0
    %1824 = vmatpush1.msra.mxu0 0.0
    %1825 = vmatprep.subr.mxu0 0.0
    %1826 = vmatpush1.msra.mxu0 0.0
    %1827 = vmatprep.subr.mxu0 0.0
    %1828 = vmatpush1.msra.mxu0 0.0
    %1829 = vmatprep.subr.mxu0 0.0
    %1830 = vmatpush1.msra.mxu0 0.0
    %1831 = vmatprep.subr.mxu0 0.0
    %1832 = vmatpush1.msra.mxu0 0.0
    %1833 = vmatprep.subr.mxu0 0.0
    %1834 = vmatpush1.msra.mxu0 0.0
    %1835 = vmatprep.subr.mxu0 0.0
    %1836 = vmatpush1.msra.mxu0 0.0
    %1837 = vmatprep.subr.mxu0 0.0
    %1838 = vmatpush1.msra.mxu0 0.0
    %1839 = vmatprep.subr.mxu0 0.0
    %1840 = vmatpush1.msra.mxu0 0.0
    %1841 = vmatprep.subr.mxu0 0.0
    %1842 = vmatpush1.msra.mxu0 0.0
    %1843 = vmatprep.subr.mxu0 0.0
    %1844 = vmatpush1.msra.mxu0 0.0
    %1845 = vmatprep.subr.mxu0 0.0
    %1846 = vmatpush1.msra.mxu0 0.0
    %1847 = vmatprep.subr.mxu0 0.0
    %1848 = vmatpush1.msra.mxu0 0.0
    %1849 = vmatprep.subr.mxu0 0.0
    %1850 = vmatpush1.msra.mxu0 0.0
    %1851 = vmatprep.subr.mxu0 0.0
    %1852 = vmatpush1.msra.mxu0 0.0
    %1853 = vmatprep.subr.mxu0 0.0
    %1854 = vmatpush1.msra.mxu0 0.0
    %1855 = vmatprep.subr.mxu0 0.0
    %1856 = vmatpush1.msra.mxu0 0.0
    %1857 = vmatprep.subr.mxu0 0.0
    %1858 = vmatpush1.msra.mxu0 0.0
    %1859 = vmatprep.subr.mxu0 0.0
    %1860 = vmatpush1.msra.mxu0 0.0
    %1861 = vmatprep.subr.mxu0 0.0
    %1862 = vmatpush1.msra.mxu0 0.0
    %1863 = vmatprep.subr.mxu0 0.0
    %1864 = vmatpush1.msra.mxu0 0.0
    %1865 = vmatprep.subr.mxu0 0.0
    %1866 = vmatpush1.msra.mxu0 0.0
    %1867 = vmatprep.subr.mxu0 0.0
    %1868 = vmatpush1.msra.mxu0 0.0
    %1869 = vmatprep.subr.mxu0 0.0
    %1870 = vmatpush1.msra.mxu0 0.0
    %1871 = vmatprep.subr.mxu0 0.0
    %1872 = vmatpush1.msra.mxu0 0.0
    %1873 = vmatprep.subr.mxu0 0.0
    %1874 = vmatpush1.msra.mxu0 0.0
    %1875 = vmatprep.subr.mxu0 0.0
    %1876 = vmatpush1.msra.mxu0 0.0
    %1877 = vmatprep.mubr.f32.mxu0 0.0
    %v1878 = vand.u32 %v1557, 4294901760
    %v1879 = vsub.f32 %v1557, %v1878
    %v1880 = vand.u32 %v1879, 4294901760
    %1881 = vmatmul.mubr.f32.gmra.mrb[0].mxu0 %v1880
    %v1882 = vpop.f32.mrb[0].mxu0
    %v1883 = vadd.f32 %v1806, %v1882
    %v1884 = vpop.f32.mrb[0].mxu0
    %1885 = vdwg.mxu0
    %1886 = vmatprep.subr.mxu0 0.0
    %v1887 = vand.u32 %v59, 4294901760
    %v1888 = vsub.f32 %v59, %v1887
    %v1889 = vand.u32 %v1888, 4294901760
    %1890 = vmatpush1.msra.mxu0 %v1889
    %1891 = vmatprep.subr.mxu0 0.0
    %v1892 = vand.u32 %v60, 4294901760
    %v1893 = vsub.f32 %v60, %v1892
    %v1894 = vand.u32 %v1893, 4294901760
    %1895 = vmatpush1.msra.mxu0 %v1894
    %1896 = vmatprep.subr.mxu0 0.0
    %v1897 = vand.u32 %v61, 4294901760
    %v1898 = vsub.f32 %v61, %v1897
    %v1899 = vand.u32 %v1898, 4294901760
    %1900 = vmatpush1.msra.mxu0 %v1899
    %1901 = vmatprep.subr.mxu0 0.0
    %v1902 = vand.u32 %v62, 4294901760
    %v1903 = vsub.f32 %v62, %v1902
    %v1904 = vand.u32 %v1903, 4294901760
    %1905 = vmatpush1.msra.mxu0 %v1904
    %1906 = vmatprep.subr.mxu0 0.0
    %1907 = vmatpush1.msra.mxu0 0.0
    %1908 = vmatprep.subr.mxu0 0.0
    %1909 = vmatpush1.msra.mxu0 0.0
    %1910 = vmatprep.subr.mxu0 0.0
    %1911 = vmatpush1.msra.mxu0 0.0
    %1912 = vmatprep.subr.mxu0 0.0
    %1913 = vmatpush1.msra.mxu0 0.0
    %1914 = vmatprep.subr.mxu0 0.0
    %1915 = vmatpush1.msra.mxu0 0.0
    %1916 = vmatprep.subr.mxu0 0.0
    %1917 = vmatpush1.msra.mxu0 0.0
    %1918 = vmatprep.subr.mxu0 0.0
    %1919 = vmatpush1.msra.mxu0 0.0
    %1920 = vmatprep.subr.mxu0 0.0
    %1921 = vmatpush1.msra.mxu0 0.0
    %1922 = vmatprep.subr.mxu0 0.0
    %1923 = vmatpush1.msra.mxu0 0.0
    %1924 = vmatprep.subr.mxu0 0.0
    %1925 = vmatpush1.msra.mxu0 0.0
    %1926 = vmatprep.subr.mxu0 0.0
    %1927 = vmatpush1.msra.mxu0 0.0
    %1928 = vmatprep.subr.mxu0 0.0
    %1929 = vmatpush1.msra.mxu0 0.0
    %1930 = vmatprep.subr.mxu0 0.0
    %1931 = vmatpush1.msra.mxu0 0.0
    %1932 = vmatprep.subr.mxu0 0.0
    %1933 = vmatpush1.msra.mxu0 0.0
    %1934 = vmatprep.subr.mxu0 0.0
    %1935 = vmatpush1.msra.mxu0 0.0
    %1936 = vmatprep.subr.mxu0 0.0
    %1937 = vmatpush1.msra.mxu0 0.0
    %1938 = vmatprep.subr.mxu0 0.0
    %1939 = vmatpush1.msra.mxu0 0.0
    %1940 = vmatprep.subr.mxu0 0.0
    %1941 = vmatpush1.msra.mxu0 0.0
    %1942 = vmatprep.subr.mxu0 0.0
    %1943 = vmatpush1.msra.mxu0 0.0
    %1944 = vmatprep.subr.mxu0 0.0
    %1945 = vmatpush1.msra.mxu0 0.0
    %1946 = vmatprep.subr.mxu0 0.0
    %1947 = vmatpush1.msra.mxu0 0.0
    %1948 = vmatprep.subr.mxu0 0.0
    %1949 = vmatpush1.msra.mxu0 0.0
    %1950 = vmatprep.subr.mxu0 0.0
    %1951 = vmatpush1.msra.mxu0 0.0
    %1952 = vmatprep.subr.mxu0 0.0
    %1953 = vmatpush1.msra.mxu0 0.0
    %1954 = vmatprep.subr.mxu0 0.0
    %1955 = vmatpush1.msra.mxu0 0.0
    %1956 = vmatprep.subr.mxu0 0.0
    %1957 = vmatpush1.msra.mxu0 0.0
    %1958 = vmatprep.subr.mxu0 0.0
    %1959 = vmatpush1.msra.mxu0 0.0
    %1960 = vmatprep.subr.mxu0 0.0
    %1961 = vmatpush1.msra.mxu0 0.0
    %1962 = vmatprep.mubr.f32.mxu0 0.0
    %v1963 = vand.u32 %v1557, 4294901760
    %1964 = vmatmul.mubr.f32.gmra.mrb[0].mxu0 %v1963
    %v1965 = vpop.f32.mrb[0].mxu0
    %v1966 = vadd.f32 %v1883, %v1965
    %v1967 = vpop.f32.mrb[0].mxu0
    %1968 = vdwg.mxu0
    %1969 = vmatprep.subr.mxu0 0.0
    %v1970 = vand.u32 %v59, 4294901760
    %1971 = vmatpush1.msra.mxu0 %v1970
    %1972 = vmatprep.subr.mxu0 0.0
    %v1973 = vand.u32 %v60, 4294901760
    %1974 = vmatpush1.msra.mxu0 %v1973
    %1975 = vmatprep.subr.mxu0 0.0
    %v1976 = vand.u32 %v61, 4294901760
    %1977 = vmatpush1.msra.mxu0 %v1976
    %1978 = vmatprep.subr.mxu0 0.0
    %v1979 = vand.u32 %v62, 4294901760
    %1980 = vmatpush1.msra.mxu0 %v1979
    %1981 = vmatprep.subr.mxu0 0.0
    %1982 = vmatpush1.msra.mxu0 0.0
    %1983 = vmatprep.subr.mxu0 0.0
    %1984 = vmatpush1.msra.mxu0 0.0
    %1985 = vmatprep.subr.mxu0 0.0
    %1986 = vmatpush1.msra.mxu0 0.0
    %1987 = vmatprep.subr.mxu0 0.0
    %1988 = vmatpush1.msra.mxu0 0.0
    %1989 = vmatprep.subr.mxu0 0.0
    %1990 = vmatpush1.msra.mxu0 0.0
    %1991 = vmatprep.subr.mxu0 0.0
    %1992 = vmatpush1.msra.mxu0 0.0
    %1993 = vmatprep.subr.mxu0 0.0
    %1994 = vmatpush1.msra.mxu0 0.0
    %1995 = vmatprep.subr.mxu0 0.0
    %1996 = vmatpush1.msra.mxu0 0.0
    %1997 = vmatprep.subr.mxu0 0.0
    %1998 = vmatpush1.msra.mxu0 0.0
    %1999 = vmatprep.subr.mxu0 0.0
    %2000 = vmatpush1.msra.mxu0 0.0
    %2001 = vmatprep.subr.mxu0 0.0
    %2002 = vmatpush1.msra.mxu0 0.0
    %2003 = vmatprep.subr.mxu0 0.0
    %2004 = vmatpush1.msra.mxu0 0.0
    %2005 = vmatprep.subr.mxu0 0.0
    %2006 = vmatpush1.msra.mxu0 0.0
    %2007 = vmatprep.subr.mxu0 0.0
    %2008 = vmatpush1.msra.mxu0 0.0
    %2009 = vmatprep.subr.mxu0 0.0
    %2010 = vmatpush1.msra.mxu0 0.0
    %2011 = vmatprep.subr.mxu0 0.0
    %2012 = vmatpush1.msra.mxu0 0.0
    %2013 = vmatprep.subr.mxu0 0.0
    %2014 = vmatpush1.msra.mxu0 0.0
    %2015 = vmatprep.subr.mxu0 0.0
    %2016 = vmatpush1.msra.mxu0 0.0
    %2017 = vmatprep.subr.mxu0 0.0
    %2018 = vmatpush1.msra.mxu0 0.0
    %2019 = vmatprep.subr.mxu0 0.0
    %2020 = vmatpush1.msra.mxu0 0.0
    %2021 = vmatprep.subr.mxu0 0.0
    %2022 = vmatpush1.msra.mxu0 0.0
    %2023 = vmatprep.subr.mxu0 0.0
    %2024 = vmatpush1.msra.mxu0 0.0
    %2025 = vmatprep.subr.mxu0 0.0
    %2026 = vmatpush1.msra.mxu0 0.0
    %2027 = vmatprep.subr.mxu0 0.0
    %2028 = vmatpush1.msra.mxu0 0.0
    %2029 = vmatprep.subr.mxu0 0.0
    %2030 = vmatpush1.msra.mxu0 0.0
    %2031 = vmatprep.subr.mxu0 0.0
    %2032 = vmatpush1.msra.mxu0 0.0
    %2033 = vmatprep.subr.mxu0 0.0
    %2034 = vmatpush1.msra.mxu0 0.0
    %2035 = vmatprep.subr.mxu0 0.0
    %2036 = vmatpush1.msra.mxu0 0.0
    %2037 = vmatprep.mubr.f32.mxu0 0.0
    %v2038 = vand.u32 %v1557, 4294901760
    %2039 = vmatmul.mubr.f32.gmra.mrb[0].mxu0 %v2038
    %v2040 = vpop.f32.mrb[0].mxu0
    %v2041 = vadd.f32 %v1966, %v2040
    %v2042 = vpop.f32.mrb[0].mxu0
    %2043 = vdwg.mxu0
    %v2044 = vmax.f32 %v577, 0.0
    %v2045 = vmax.f32 %v1065, 0.0
    %v2046 = vmax.f32 %v1553, 0.0
    %v2047 = vmax.f32 %v2041, 0.0
    %2048 = vst.msk [vmem:[#allocation7] sm:$0xff] %vm91, %v2044
    %2049 = vst.msk [vmem:[#allocation7 + $0x8] sm:$0xff] %vm91, %v2045
    %2050 = vst.msk [vmem:[#allocation7 + $0x10] sm:$0xff] %vm91, %v2046
    %2051 = vst.msk [vmem:[#allocation7 + $0x18] sm:$0xff] %vm91, %v2047
    // Predicated region
    $region22: #{tpu_custom_call.1} parent=1 // pred_check
      _
    $region23: #{tpu_custom_call.1} parent=1 // pred_check_branch
      %2053 = sbr.rel (0) target = $region25
    $region24: #{tpu_custom_call.1} parent=1 // pred_region
      %s2055 = ssub.s32 512, 512
      %2056 = vsyncadd [#allocation4], %s2055
      %s2057 = sshll.u32 [#allocation7], 4
      %s2058 = int_to_ptr.vmem [resolvable:$true] %s2057
      %2063 = dma.vmem_to_hbm [thread:$0]  %s2058, 512, %s3, [#allocation4], 128, 128, 8
    $region25: #{tpu_custom_call.1} parent=1 // pred_fallthru
      _
    // Predicated region
    $region26: #{tpu_custom_call.1} parent=1 // pred_check
      _
    $region27: #{tpu_custom_call.1} parent=1 // pred_check_branch
      %2065 = sbr.rel (0) target = $region29
    $region28: #{tpu_custom_call.1} parent=1 // pred_region
      %2066 = dma.done [#allocation4], 512
    $region29: #{tpu_custom_call.1} parent=1 // pred_fallthru
      _
    %2067 = vsyncpa [#allocation3], 1
    %2068 = vsyncpa [#allocation6], 1
    %2069 = vsyncpa [#allocation4], 1

</llo_original>
